<compile_context>
chip_gen: v5e
topology: v5e:2x2
jax: 0.10.0
libtpu: 0.0.40
codegen_flags: <defaults>
</compile_context>

<pallas_src>
import functools

import jax
import jax.numpy as jnp
from jax.experimental import pallas as pl
from jax.experimental.pallas import tpu as pltpu


def _flash_prompt_kernel(q_ref, k_ref, v_ref, o_ref, m_sc, l_sc, acc_sc, *,
                         scale, tq, tk, qpk, head_size):
    # q_ref:   (1, tq, qpk*head_size)   all query heads of this KV group
    # k_ref:   (1, tk, head_size)       one KV head
    # v_ref:   (1, tk, head_size)
    # o_ref:   (1, tq, qpk*head_size)
    # m_sc/l_sc: (qpk, tq, 1) f32       running max / running sum
    # acc_sc:    (qpk, tq, head_size) f32  running output accumulator
    qi = pl.program_id(2)
    ki = pl.program_id(3)
    nkv = pl.num_programs(3)

    q_start = qi * tq
    k_start = ki * tk

    @pl.when(ki == 0)
    def _init():
        m_sc[...] = jnp.full(m_sc.shape, -jnp.inf, m_sc.dtype)
        l_sc[...] = jnp.zeros(l_sc.shape, l_sc.dtype)
        acc_sc[...] = jnp.zeros(acc_sc.shape, acc_sc.dtype)

    # Does this KV tile intersect the causal region of this Q tile at all?
    block_needed = k_start <= q_start + (tq - 1)
    # Is it entirely at-or-below the diagonal (no masking needed)?
    block_unmasked = k_start + (tk - 1) <= q_start

    def compute(apply_mask):
        k = k_ref[0]                                   # (tk, D) native dtype
        v = v_ref[0]                                   # (tk, D)
        if apply_mask:
            row = q_start + jax.lax.broadcasted_iota(jnp.int32, (tq, tk), 0)
            col = k_start + jax.lax.broadcasted_iota(jnp.int32, (tq, tk), 1)
            causal = col <= row
        for hh in range(qpk):                          # static; qpk is small
            q_h = q_ref[0, :, hh * head_size:(hh + 1) * head_size]  # (tq, D)
            q_h = q_h * jnp.array(scale, dtype=q_h.dtype)           # fold scale
            # QK^T on the MXU, native-dtype operands, f32 accumulation.
            s = jax.lax.dot_general(q_h, k, (((1,), (1,)), ((), ())),
                                    preferred_element_type=jnp.float32)
            if apply_mask:
                s = jnp.where(causal, s, -jnp.inf)
            m_prev = m_sc[hh]                                       # (tq, 1)
            m_new = jnp.maximum(m_prev, jnp.max(s, axis=-1, keepdims=True))
            alpha = jnp.exp(m_prev - m_new)
            p = jnp.exp(s - m_new)                                  # (tq, tk)
            l_sc[hh] = alpha * l_sc[hh] + jnp.sum(p, axis=-1, keepdims=True)
            acc_sc[hh] = alpha * acc_sc[hh] + jnp.dot(
                p.astype(v.dtype), v, preferred_element_type=jnp.float32)
            m_sc[hh] = m_new

    @pl.when(block_unmasked)
    def _below_diag():
        compute(apply_mask=False)

    @pl.when(jnp.logical_and(block_needed, jnp.logical_not(block_unmasked)))
    def _on_diag():
        compute(apply_mask=True)

    @pl.when(ki == nkv - 1)
    def _finalize():
        for hh in range(qpk):
            inv_l = pl.reciprocal(l_sc[hh], approx=True)
            o_ref[0, :, hh * head_size:(hh + 1) * head_size] = (
                acc_sc[hh] * inv_l).astype(o_ref.dtype)


def hpu_prompt_attention(query, key, value, *, num_heads, num_kv_heads,
                         head_size, scale, block_q=256, block_k=256):
    """Prefill forward of HPUAttentionImpl (causal SDPA with GQA).

    query: [B, S, num_heads*head_size], key/value: [B, S, num_kv_heads*head_size]
    returns [B, S, num_heads*head_size].

    block_q / block_k are the per-generation tile sizes: multiples of 128 sized
    against ~16 MiB scoped VMEM on v5e, multiples of 256 on v6e (128 MiB VMEM)
    and v7x (size against 64 MiB). Defaults (256, 256) fit every generation.
    """
    B, S, hidden_q = query.shape
    _, Skv, hidden_kv = key.shape
    assert hidden_q == num_heads * head_size
    assert hidden_kv == num_kv_heads * head_size
    assert num_heads % num_kv_heads == 0
    qpk = num_heads // num_kv_heads

    # TODO(synk): cached-prefix prefill (Skv > S) needs a (Skv - S) causal offset.
    assert Skv == S, "causal mask assumes Skv == S (no cached prefix)"
    # Last-dim blocks must stay lane-aligned (head slices at 128 boundaries).
    assert head_size % 128 == 0, "head_size must be a multiple of 128 here"

    tq = block_q if S % block_q == 0 else S
    tk = block_k if Skv % block_k == 0 else Skv
    assert tq % 8 == 0 and tk % 8 == 0

    grid = (B, num_kv_heads, S // tq, Skv // tk)

    kernel = functools.partial(_flash_prompt_kernel, scale=float(scale),
                               tq=tq, tk=tk, qpk=qpk, head_size=head_size)

    return pl.pallas_call(
        kernel,
        out_shape=jax.ShapeDtypeStruct((B, S, num_heads * head_size),
                                       query.dtype),
        grid=grid,
        in_specs=[
            # all qpk query heads of KV group g = contiguous last-dim slice
            pl.BlockSpec((1, tq, qpk * head_size),
                         lambda b, g, qi, ki: (b, qi, g)),
            pl.BlockSpec((1, tk, head_size),
                         lambda b, g, qi, ki: (b, ki, g)),
            pl.BlockSpec((1, tk, head_size),
                         lambda b, g, qi, ki: (b, ki, g)),
        ],
        out_specs=pl.BlockSpec((1, tq, qpk * head_size),
                               lambda b, g, qi, ki: (b, qi, g)),
        scratch_shapes=[
            pltpu.VMEM((qpk, tq, 1), jnp.float32),           # running max
            pltpu.VMEM((qpk, tq, 1), jnp.float32),           # running sum
            pltpu.VMEM((qpk, tq, head_size), jnp.float32),   # accumulator
        ],
        compiler_params=pltpu.CompilerParams(
            dimension_semantics=("parallel", "parallel", "parallel",
                                 "arbitrary")),
    )(query, key, value)


def _reference(query, key, value, *, num_heads, num_kv_heads, head_size, scale):
    """Pure-JAX reference of the same forward (causal GQA SDPA)."""
    B, S, _ = query.shape
    _, Skv, _ = key.shape
    qpk = num_heads // num_kv_heads
    q = query.reshape(B, S, num_heads, head_size).astype(jnp.float32)
    k = key.reshape(B, Skv, num_kv_heads, head_size).astype(jnp.float32)
    v = value.reshape(B, Skv, num_kv_heads, head_size).astype(jnp.float32)
    k = jnp.repeat(k, qpk, axis=2)
    v = jnp.repeat(v, qpk, axis=2)
    s = jnp.einsum("bqhd,bkhd->bhqk", q, k) * scale
    mask = jnp.tril(jnp.ones((S, Skv), dtype=bool))
    s = jnp.where(mask[None, None], s, -jnp.inf)
    p = jax.nn.softmax(s, axis=-1)
    o = jnp.einsum("bhqk,bkhd->bqhd", p, v)
    return o.reshape(B, S, num_heads * head_size).astype(query.dtype)


if __name__ == "__main__":
    num_heads = 4
    num_kv_heads = 2
    head_size = 128          # in HPUPagedAttention's supported head sizes
    scale = 1.0 / (head_size ** 0.5)

    rng = jax.random.PRNGKey(0)

    # --- test 1: small single-tile prefill, f32 ---
    B, S = 2, 16
    r1, r2, r3, rng = jax.random.split(rng, 4)
    q = jax.random.normal(r1, (B, S, num_heads * head_size), dtype=jnp.float32)
    k = jax.random.normal(r2, (B, S, num_kv_heads * head_size), dtype=jnp.float32)
    v = jax.random.normal(r3, (B, S, num_kv_heads * head_size), dtype=jnp.float32)

    out = hpu_prompt_attention(q, k, v, num_heads=num_heads,
                               num_kv_heads=num_kv_heads, head_size=head_size,
                               scale=scale)
    out = jax.block_until_ready(out)
    ref = _reference(q, k, v, num_heads=num_heads, num_kv_heads=num_kv_heads,
                     head_size=head_size, scale=scale)
    assert out.shape == (B, S, num_heads * head_size)
    err = float(jnp.max(jnp.abs(out - ref)))
    assert err < 1e-2, f"f32 mismatch vs reference: {err}"

    # --- test 2: multi-tile prefill (online softmax + causal tile skip), bf16 ---
    B2, S2 = 1, 128
    r4, r5, r6, rng = jax.random.split(rng, 4)
    q2 = jax.random.normal(r4, (B2, S2, num_heads * head_size), dtype=jnp.bfloat16)
    k2 = jax.random.normal(r5, (B2, S2, num_kv_heads * head_size), dtype=jnp.bfloat16)
    v2 = jax.random.normal(r6, (B2, S2, num_kv_heads * head_size), dtype=jnp.bfloat16)

    out2 = hpu_prompt_attention(q2, k2, v2, num_heads=num_heads,
                                num_kv_heads=num_kv_heads, head_size=head_size,
                                scale=scale, block_q=64, block_k=64)
    out2 = jax.block_until_ready(out2)
    ref2 = _reference(q2, k2, v2, num_heads=num_heads,
                      num_kv_heads=num_kv_heads, head_size=head_size,
                      scale=scale)
    err2 = float(jnp.max(jnp.abs(out2.astype(jnp.float32)
                                 - ref2.astype(jnp.float32))))
    assert err2 < 5e-2, f"bf16 mismatch vs reference: {err2}"

    print("KERNEL_OK")
</pallas_src>

<mosaic_0001>
module attributes {stable_mosaic.version = 11 : i64} {
  func.func @_flash_prompt_kernel(%arg0: i32, %arg1: i32, %arg2: i32, %arg3: i32, %arg4: memref<1x16x256xf32, #tpu.memory_space<vmem>>, %arg5: memref<1x16x128xf32, #tpu.memory_space<vmem>>, %arg6: memref<1x16x128xf32, #tpu.memory_space<vmem>>, %arg7: memref<1x16x256xf32, #tpu.memory_space<vmem>>, %arg8: memref<2x16x1xf32, #tpu.memory_space<vmem>>, %arg9: memref<2x16x1xf32, #tpu.memory_space<vmem>>, %arg10: memref<2x16x128xf32, #tpu.memory_space<vmem>>) attributes {dimension_semantics = [#tpu.dimension_semantics<parallel>, #tpu.dimension_semantics<parallel>, #tpu.dimension_semantics<parallel>, #tpu.dimension_semantics<arbitrary>], iteration_bounds = array<i64: 2, 2, 1, 1>, scalar_prefetch = 0 : i64, scratch_operands = 3 : i64, tpu.core_type = #tpu.core_type<tc>, window_params = [{transform_indices = @transform_0, window_bounds = array<i64: 1, 16, 256>}, {transform_indices = @transform_1, window_bounds = array<i64: 1, 16, 128>}, {transform_indices = @transform_2, window_bounds = array<i64: 1, 16, 128>}, {transform_indices = @transform_3, window_bounds = array<i64: 1, 16, 256>}]} {
    %c16_i32 = arith.constant 16 : i32
    %0 = arith.muli %arg2, %c16_i32 : i32
    %c16_i32_0 = arith.constant 16 : i32
    %1 = arith.muli %arg3, %c16_i32_0 : i32
    %c0_i32 = arith.constant 0 : i32
    %2 = arith.cmpi eq, %arg3, %c0_i32 : i32
    %3 = arith.extui %2 : i1 to i32
    %c0_i32_1 = arith.constant 0 : i32
    %4 = arith.cmpi ne, %3, %c0_i32_1 : i32
    scf.if %4 {
      %cst = arith.constant 0xFF800000 : f32
      %18 = vector.broadcast %cst : f32 to vector<2x16x1xf32>
      %c0 = arith.constant 0 : index
      %c0_7 = arith.constant 0 : index
      %c0_8 = arith.constant 0 : index
      %19 = vector.load %arg8[%c0, %c0_7, %c0_8] : memref<2x16x1xf32, #tpu.memory_space<vmem>>, vector<2x16x1xf32>
      tpu.vector_store %arg8[%c0, %c0_7, %c0_8], %18 {strides = array<i32>} : memref<2x16x1xf32, #tpu.memory_space<vmem>>, vector<2x16x1xf32>,
      %cst_9 = arith.constant 0.000000e+00 : f32
      %20 = vector.broadcast %cst_9 : f32 to vector<2x16x1xf32>
      %c0_10 = arith.constant 0 : index
      %c0_11 = arith.constant 0 : index
      %c0_12 = arith.constant 0 : index
      %21 = vector.load %arg9[%c0_10, %c0_11, %c0_12] : memref<2x16x1xf32, #tpu.memory_space<vmem>>, vector<2x16x1xf32>
      tpu.vector_store %arg9[%c0_10, %c0_11, %c0_12], %20 {strides = array<i32>} : memref<2x16x1xf32, #tpu.memory_space<vmem>>, vector<2x16x1xf32>,
      %cst_13 = arith.constant 0.000000e+00 : f32
      %22 = vector.broadcast %cst_13 : f32 to vector<2x16x128xf32>
      %c0_14 = arith.constant 0 : index
      %c0_15 = arith.constant 0 : index
      %c0_16 = arith.constant 0 : index
      %23 = vector.load %arg10[%c0_14, %c0_15, %c0_16] : memref<2x16x128xf32, #tpu.memory_space<vmem>>, vector<2x16x128xf32>
      tpu.vector_store %arg10[%c0_14, %c0_15, %c0_16], %22 {strides = array<i32>} : memref<2x16x128xf32, #tpu.memory_space<vmem>>, vector<2x16x128xf32>,
    } else {
    }
    %c15_i32 = arith.constant 15 : i32
    %5 = arith.addi %0, %c15_i32 : i32
    %6 = arith.cmpi sle, %1, %5 : i32
    %c15_i32_2 = arith.constant 15 : i32
    %7 = arith.addi %1, %c15_i32_2 : i32
    %8 = arith.cmpi sle, %7, %0 : i32
    %9 = arith.extui %8 : i1 to i32
    %c0_i32_3 = arith.constant 0 : i32
    %10 = arith.cmpi ne, %9, %c0_i32_3 : i32
    scf.if %10 {
      %c0 = arith.constant 0 : index
      %c0_7 = arith.constant 0 : index
      %c0_8 = arith.constant 0 : index
      %18 = vector.load %arg5[%c0, %c0_7, %c0_8] : memref<1x16x128xf32, #tpu.memory_space<vmem>>, vector<1x16x128xf32>
      %19 = vector.shape_cast %18 : vector<1x16x128xf32> to vector<16x128xf32>
      %c0_9 = arith.constant 0 : index
      %c0_10 = arith.constant 0 : index
      %c0_11 = arith.constant 0 : index
      %20 = vector.load %arg6[%c0_9, %c0_10, %c0_11] : memref<1x16x128xf32, #tpu.memory_space<vmem>>, vector<1x16x128xf32>
      %21 = vector.shape_cast %20 : vector<1x16x128xf32> to vector<16x128xf32>
      %c0_12 = arith.constant 0 : index
      %c0_13 = arith.constant 0 : index
      %c0_14 = arith.constant 0 : index
      %22 = vector.load %arg4[%c0_12, %c0_13, %c0_14] : memref<1x16x256xf32, #tpu.memory_space<vmem>>, vector<1x16x128xf32>
      %23 = vector.shape_cast %22 : vector<1x16x128xf32> to vector<16x128xf32>
      %cst = arith.constant 0.0883883461 : f32
      %24 = vector.broadcast %cst : f32 to vector<16x128xf32>
      %25 = arith.mulf %23, %24 : vector<16x128xf32>
      %cst_15 = arith.constant dense<0.000000e+00> : vector<16x16xf32>
      %26 = tpu.matmul %25, %19, %cst_15 {dimension_numbers = #tpu.dot_dimension_numbers<[1], [1], [0], [0], [0, 0, 1, 0], [], []>} : vector<16x128xf32>, vector<16x128xf32>, vector<16x16xf32> -> vector<16x16xf32>
      %c0_16 = arith.constant 0 : index
      %c0_17 = arith.constant 0 : index
      %c0_18 = arith.constant 0 : index
      %27 = vector.load %arg8[%c0_16, %c0_17, %c0_18] : memref<2x16x1xf32, #tpu.memory_space<vmem>>, vector<1x16x1xf32>
      %28 = vector.shape_cast %27 : vector<1x16x1xf32> to vector<16x1xf32>
      %cst_19 = arith.constant dense<0xFF800000> : vector<16xf32>
      %29 = vector.multi_reduction <maximumf>, %26, %cst_19 [1] : vector<16x16xf32> to vector<16xf32>
      %30 = vector.shape_cast %29 : vector<16xf32> to vector<16x1xf32>
      %31 = arith.maximumf %28, %30 : vector<16x1xf32>
      %32 = arith.subf %28, %31 : vector<16x1xf32>
      %33 = math.exp %32 : vector<16x1xf32>
      %34 = vector.broadcast %31 : vector<16x1xf32> to vector<16x16xf32>
      %35 = arith.subf %26, %34 : vector<16x16xf32>
      %36 = math.exp %35 : vector<16x16xf32>
      %c0_20 = arith.constant 0 : index
      %c0_21 = arith.constant 0 : index
      %c0_22 = arith.constant 0 : index
      %37 = vector.load %arg9[%c0_20, %c0_21, %c0_22] : memref<2x16x1xf32, #tpu.memory_space<vmem>>, vector<1x16x1xf32>
      %38 = vector.shape_cast %37 : vector<1x16x1xf32> to vector<16x1xf32>
      %39 = arith.mulf %33, %38 : vector<16x1xf32>
      %cst_23 = arith.constant dense<0.000000e+00> : vector<16xf32>
      %40 = vector.multi_reduction <add>, %36, %cst_23 [1] : vector<16x16xf32> to vector<16xf32>
      %41 = vector.shape_cast %40 : vector<16xf32> to vector<16x1xf32>
      %42 = arith.addf %39, %41 : vector<16x1xf32>
      %c0_24 = arith.constant 0 : index
      %c0_25 = arith.constant 0 : index
      %c0_26 = arith.constant 0 : index
      %43 = vector.load %arg9[%c0_24, %c0_25, %c0_26] : memref<2x16x1xf32, #tpu.memory_space<vmem>>, vector<1x16x1xf32>
      %44 = vector.shape_cast %43 : vector<1x16x1xf32> to vector<16x1xf32>
      %45 = vector.shape_cast %42 : vector<16x1xf32> to vector<1x16x1xf32>
      tpu.vector_store %arg9[%c0_24, %c0_25, %c0_26], %45 {strides = array<i32>} : memref<2x16x1xf32, #tpu.memory_space<vmem>>, vector<1x16x1xf32>,
      %c0_27 = arith.constant 0 : index
      %c0_28 = arith.constant 0 : index
      %c0_29 = arith.constant 0 : index
      %46 = vector.load %arg10[%c0_27, %c0_28, %c0_29] : memref<2x16x128xf32, #tpu.memory_space<vmem>>, vector<1x16x128xf32>
      %47 = vector.shape_cast %46 : vector<1x16x128xf32> to vector<16x128xf32>
      %48 = vector.broadcast %33 : vector<16x1xf32> to vector<16x128xf32>
      %49 = arith.mulf %48, %47 : vector<16x128xf32>
      %cst_30 = arith.constant dense<0.000000e+00> : vector<16x128xf32>
      %50 = tpu.matmul %36, %21, %cst_30 {dimension_numbers = #tpu.dot_dimension_numbers<[1], [0], [0], [1], [0, 0, 1, 1], [], []>} : vector<16x16xf32>, vector<16x128xf32>, vector<16x128xf32> -> vector<16x128xf32>
      %51 = arith.addf %49, %50 : vector<16x128xf32>
      %c0_31 = arith.constant 0 : index
      %c0_32 = arith.constant 0 : index
      %c0_33 = arith.constant 0 : index
      %52 = vector.load %arg10[%c0_31, %c0_32, %c0_33] : memref<2x16x128xf32, #tpu.memory_space<vmem>>, vector<1x16x128xf32>
      %53 = vector.shape_cast %52 : vector<1x16x128xf32> to vector<16x128xf32>
      %54 = vector.shape_cast %51 : vector<16x128xf32> to vector<1x16x128xf32>
      tpu.vector_store %arg10[%c0_31, %c0_32, %c0_33], %54 {strides = array<i32>} : memref<2x16x128xf32, #tpu.memory_space<vmem>>, vector<1x16x128xf32>,
      %c0_34 = arith.constant 0 : index
      %c0_35 = arith.constant 0 : index
      %c0_36 = arith.constant 0 : index
      %55 = vector.load %arg8[%c0_34, %c0_35, %c0_36] : memref<2x16x1xf32, #tpu.memory_space<vmem>>, vector<1x16x1xf32>
      %56 = vector.shape_cast %55 : vector<1x16x1xf32> to vector<16x1xf32>
      %57 = vector.shape_cast %31 : vector<16x1xf32> to vector<1x16x1xf32>
      tpu.vector_store %arg8[%c0_34, %c0_35, %c0_36], %57 {strides = array<i32>} : memref<2x16x1xf32, #tpu.memory_space<vmem>>, vector<1x16x1xf32>,
      %c0_37 = arith.constant 0 : index
      %c0_38 = arith.constant 0 : index
      %c128 = arith.constant 128 : index
      %58 = vector.load %arg4[%c0_37, %c0_38, %c128] : memref<1x16x256xf32, #tpu.memory_space<vmem>>, vector<1x16x128xf32>
      %59 = vector.shape_cast %58 : vector<1x16x128xf32> to vector<16x128xf32>
      %cst_39 = arith.constant 0.0883883461 : f32
      %60 = vector.broadcast %cst_39 : f32 to vector<16x128xf32>
      %61 = arith.mulf %59, %60 : vector<16x128xf32>
      %cst_40 = arith.constant dense<0.000000e+00> : vector<16x16xf32>
      %62 = tpu.matmul %61, %19, %cst_40 {dimension_numbers = #tpu.dot_dimension_numbers<[1], [1], [0], [0], [0, 0, 1, 0], [], []>} : vector<16x128xf32>, vector<16x128xf32>, vector<16x16xf32> -> vector<16x16xf32>
      %c1 = arith.constant 1 : index
      %c0_41 = arith.constant 0 : index
      %c0_42 = arith.constant 0 : index
      %63 = vector.load %arg8[%c1, %c0_41, %c0_42] : memref<2x16x1xf32, #tpu.memory_space<vmem>>, vector<1x16x1xf32>
      %64 = vector.shape_cast %63 : vector<1x16x1xf32> to vector<16x1xf32>
      %cst_43 = arith.constant dense<0xFF800000> : vector<16xf32>
      %65 = vector.multi_reduction <maximumf>, %62, %cst_43 [1] : vector<16x16xf32> to vector<16xf32>
      %66 = vector.shape_cast %65 : vector<16xf32> to vector<16x1xf32>
      %67 = arith.maximumf %64, %66 : vector<16x1xf32>
      %68 = arith.subf %64, %67 : vector<16x1xf32>
      %69 = math.exp %68 : vector<16x1xf32>
      %70 = vector.broadcast %67 : vector<16x1xf32> to vector<16x16xf32>
      %71 = arith.subf %62, %70 : vector<16x16xf32>
      %72 = math.exp %71 : vector<16x16xf32>
      %c1_44 = arith.constant 1 : index
      %c0_45 = arith.constant 0 : index
      %c0_46 = arith.constant 0 : index
      %73 = vector.load %arg9[%c1_44, %c0_45, %c0_46] : memref<2x16x1xf32, #tpu.memory_space<vmem>>, vector<1x16x1xf32>
      %74 = vector.shape_cast %73 : vector<1x16x1xf32> to vector<16x1xf32>
      %75 = arith.mulf %69, %74 : vector<16x1xf32>
      %cst_47 = arith.constant dense<0.000000e+00> : vector<16xf32>
      %76 = vector.multi_reduction <add>, %72, %cst_47 [1] : vector<16x16xf32> to vector<16xf32>
      %77 = vector.shape_cast %76 : vector<16xf32> to vector<16x1xf32>
      %78 = arith.addf %75, %77 : vector<16x1xf32>
      %c1_48 = arith.constant 1 : index
      %c0_49 = arith.constant 0 : index
      %c0_50 = arith.constant 0 : index
      %79 = vector.load %arg9[%c1_48, %c0_49, %c0_50] : memref<2x16x1xf32, #tpu.memory_space<vmem>>, vector<1x16x1xf32>
      %80 = vector.shape_cast %79 : vector<1x16x1xf32> to vector<16x1xf32>
      %81 = vector.shape_cast %78 : vector<16x1xf32> to vector<1x16x1xf32>
      tpu.vector_store %arg9[%c1_48, %c0_49, %c0_50], %81 {strides = array<i32>} : memref<2x16x1xf32, #tpu.memory_space<vmem>>, vector<1x16x1xf32>,
      %c1_51 = arith.constant 1 : index
      %c0_52 = arith.constant 0 : index
      %c0_53 = arith.constant 0 : index
      %82 = vector.load %arg10[%c1_51, %c0_52, %c0_53] : memref<2x16x128xf32, #tpu.memory_space<vmem>>, vector<1x16x128xf32>
      %83 = vector.shape_cast %82 : vector<1x16x128xf32> to vector<16x128xf32>
      %84 = vector.broadcast %69 : vector<16x1xf32> to vector<16x128xf32>
      %85 = arith.mulf %84, %83 : vector<16x128xf32>
      %cst_54 = arith.constant dense<0.000000e+00> : vector<16x128xf32>
      %86 = tpu.matmul %72, %21, %cst_54 {dimension_numbers = #tpu.dot_dimension_numbers<[1], [0], [0], [1], [0, 0, 1, 1], [], []>} : vector<16x16xf32>, vector<16x128xf32>, vector<16x128xf32> -> vector<16x128xf32>
      %87 = arith.addf %85, %86 : vector<16x128xf32>
      %c1_55 = arith.constant 1 : index
      %c0_56 = arith.constant 0 : index
      %c0_57 = arith.constant 0 : index
      %88 = vector.load %arg10[%c1_55, %c0_56, %c0_57] : memref<2x16x128xf32, #tpu.memory_space<vmem>>, vector<1x16x128xf32>
      %89 = vector.shape_cast %88 : vector<1x16x128xf32> to vector<16x128xf32>
      %90 = vector.shape_cast %87 : vector<16x128xf32> to vector<1x16x128xf32>
      tpu.vector_store %arg10[%c1_55, %c0_56, %c0_57], %90 {strides = array<i32>} : memref<2x16x128xf32, #tpu.memory_space<vmem>>, vector<1x16x128xf32>,
      %c1_58 = arith.constant 1 : index
      %c0_59 = arith.constant 0 : index
      %c0_60 = arith.constant 0 : index
      %91 = vector.load %arg8[%c1_58, %c0_59, %c0_60] : memref<2x16x1xf32, #tpu.memory_space<vmem>>, vector<1x16x1xf32>
      %92 = vector.shape_cast %91 : vector<1x16x1xf32> to vector<16x1xf32>
      %93 = vector.shape_cast %67 : vector<16x1xf32> to vector<1x16x1xf32>
      tpu.vector_store %arg8[%c1_58, %c0_59, %c0_60], %93 {strides = array<i32>} : memref<2x16x1xf32, #tpu.memory_space<vmem>>, vector<1x16x1xf32>,
    } else {
    }
    %true = arith.constant true
    %11 = arith.xori %8, %true : i1
    %12 = arith.andi %6, %11 : i1
    %13 = arith.extui %12 : i1 to i32
    %c0_i32_4 = arith.constant 0 : i32
    %14 = arith.cmpi ne, %13, %c0_i32_4 : i32
    scf.if %14 {
      %c0 = arith.constant 0 : index
      %c0_7 = arith.constant 0 : index
      %c0_8 = arith.constant 0 : index
      %18 = vector.load %arg5[%c0, %c0_7, %c0_8] : memref<1x16x128xf32, #tpu.memory_space<vmem>>, vector<1x16x128xf32>
      %19 = vector.shape_cast %18 : vector<1x16x128xf32> to vector<16x128xf32>
      %c0_9 = arith.constant 0 : index
      %c0_10 = arith.constant 0 : index
      %c0_11 = arith.constant 0 : index
      %20 = vector.load %arg6[%c0_9, %c0_10, %c0_11] : memref<1x16x128xf32, #tpu.memory_space<vmem>>, vector<1x16x128xf32>
      %21 = vector.shape_cast %20 : vector<1x16x128xf32> to vector<16x128xf32>
      %22 = tpu.iota {dimensions = array<i32: 0>} : vector<16x16xi32>
      %23 = vector.broadcast %0 : i32 to vector<16x16xi32>
      %24 = arith.addi %23, %22 : vector<16x16xi32>
      %25 = tpu.iota {dimensions = array<i32: 1>} : vector<16x16xi32>
      %26 = vector.broadcast %1 : i32 to vector<16x16xi32>
      %27 = arith.addi %26, %25 : vector<16x16xi32>
      %28 = arith.cmpi sle, %27, %24 : vector<16x16xi32>
      %c0_12 = arith.constant 0 : index
      %c0_13 = arith.constant 0 : index
      %c0_14 = arith.constant 0 : index
      %29 = vector.load %arg4[%c0_12, %c0_13, %c0_14] : memref<1x16x256xf32, #tpu.memory_space<vmem>>, vector<1x16x128xf32>
      %30 = vector.shape_cast %29 : vector<1x16x128xf32> to vector<16x128xf32>
      %cst = arith.constant 0.0883883461 : f32
      %31 = vector.broadcast %cst : f32 to vector<16x128xf32>
      %32 = arith.mulf %30, %31 : vector<16x128xf32>
      %cst_15 = arith.constant dense<0.000000e+00> : vector<16x16xf32>
      %33 = tpu.matmul %32, %19, %cst_15 {dimension_numbers = #tpu.dot_dimension_numbers<[1], [1], [0], [0], [0, 0, 1, 0], [], []>} : vector<16x128xf32>, vector<16x128xf32>, vector<16x16xf32> -> vector<16x16xf32>
      %cst_16 = arith.constant 0xFF800000 : f32
      %34 = vector.broadcast %cst_16 : f32 to vector<16x16xf32>
      %35 = arith.select %28, %33, %34 : vector<16x16xi1>, vector<16x16xf32>
      %c0_17 = arith.constant 0 : index
      %c0_18 = arith.constant 0 : index
      %c0_19 = arith.constant 0 : index
      %36 = vector.load %arg8[%c0_17, %c0_18, %c0_19] : memref<2x16x1xf32, #tpu.memory_space<vmem>>, vector<1x16x1xf32>
      %37 = vector.shape_cast %36 : vector<1x16x1xf32> to vector<16x1xf32>
      %cst_20 = arith.constant dense<0xFF800000> : vector<16xf32>
      %38 = vector.multi_reduction <maximumf>, %35, %cst_20 [1] : vector<16x16xf32> to vector<16xf32>
      %39 = vector.shape_cast %38 : vector<16xf32> to vector<16x1xf32>
      %40 = arith.maximumf %37, %39 : vector<16x1xf32>
      %41 = arith.subf %37, %40 : vector<16x1xf32>
      %42 = math.exp %41 : vector<16x1xf32>
      %43 = vector.broadcast %40 : vector<16x1xf32> to vector<16x16xf32>
      %44 = arith.subf %35, %43 : vector<16x16xf32>
      %45 = math.exp %44 : vector<16x16xf32>
      %c0_21 = arith.constant 0 : index
      %c0_22 = arith.constant 0 : index
      %c0_23 = arith.constant 0 : index
      %46 = vector.load %arg9[%c0_21, %c0_22, %c0_23] : memref<2x16x1xf32, #tpu.memory_space<vmem>>, vector<1x16x1xf32>
      %47 = vector.shape_cast %46 : vector<1x16x1xf32> to vector<16x1xf32>
      %48 = arith.mulf %42, %47 : vector<16x1xf32>
      %cst_24 = arith.constant dense<0.000000e+00> : vector<16xf32>
      %49 = vector.multi_reduction <add>, %45, %cst_24 [1] : vector<16x16xf32> to vector<16xf32>
      %50 = vector.shape_cast %49 : vector<16xf32> to vector<16x1xf32>
      %51 = arith.addf %48, %50 : vector<16x1xf32>
      %c0_25 = arith.constant 0 : index
      %c0_26 = arith.constant 0 : index
      %c0_27 = arith.constant 0 : index
      %52 = vector.load %arg9[%c0_25, %c0_26, %c0_27] : memref<2x16x1xf32, #tpu.memory_space<vmem>>, vector<1x16x1xf32>
      %53 = vector.shape_cast %52 : vector<1x16x1xf32> to vector<16x1xf32>
      %54 = vector.shape_cast %51 : vector<16x1xf32> to vector<1x16x1xf32>
      tpu.vector_store %arg9[%c0_25, %c0_26, %c0_27], %54 {strides = array<i32>} : memref<2x16x1xf32, #tpu.memory_space<vmem>>, vector<1x16x1xf32>,
      %c0_28 = arith.constant 0 : index
      %c0_29 = arith.constant 0 : index
      %c0_30 = arith.constant 0 : index
      %55 = vector.load %arg10[%c0_28, %c0_29, %c0_30] : memref<2x16x128xf32, #tpu.memory_space<vmem>>, vector<1x16x128xf32>
      %56 = vector.shape_cast %55 : vector<1x16x128xf32> to vector<16x128xf32>
      %57 = vector.broadcast %42 : vector<16x1xf32> to vector<16x128xf32>
      %58 = arith.mulf %57, %56 : vector<16x128xf32>
      %cst_31 = arith.constant dense<0.000000e+00> : vector<16x128xf32>
      %59 = tpu.matmul %45, %21, %cst_31 {dimension_numbers = #tpu.dot_dimension_numbers<[1], [0], [0], [1], [0, 0, 1, 1], [], []>} : vector<16x16xf32>, vector<16x128xf32>, vector<16x128xf32> -> vector<16x128xf32>
      %60 = arith.addf %58, %59 : vector<16x128xf32>
      %c0_32 = arith.constant 0 : index
      %c0_33 = arith.constant 0 : index
      %c0_34 = arith.constant 0 : index
      %61 = vector.load %arg10[%c0_32, %c0_33, %c0_34] : memref<2x16x128xf32, #tpu.memory_space<vmem>>, vector<1x16x128xf32>
      %62 = vector.shape_cast %61 : vector<1x16x128xf32> to vector<16x128xf32>
      %63 = vector.shape_cast %60 : vector<16x128xf32> to vector<1x16x128xf32>
      tpu.vector_store %arg10[%c0_32, %c0_33, %c0_34], %63 {strides = array<i32>} : memref<2x16x128xf32, #tpu.memory_space<vmem>>, vector<1x16x128xf32>,
      %c0_35 = arith.constant 0 : index
      %c0_36 = arith.constant 0 : index
      %c0_37 = arith.constant 0 : index
      %64 = vector.load %arg8[%c0_35, %c0_36, %c0_37] : memref<2x16x1xf32, #tpu.memory_space<vmem>>, vector<1x16x1xf32>
      %65 = vector.shape_cast %64 : vector<1x16x1xf32> to vector<16x1xf32>
      %66 = vector.shape_cast %40 : vector<16x1xf32> to vector<1x16x1xf32>
      tpu.vector_store %arg8[%c0_35, %c0_36, %c0_37], %66 {strides = array<i32>} : memref<2x16x1xf32, #tpu.memory_space<vmem>>, vector<1x16x1xf32>,
      %c0_38 = arith.constant 0 : index
      %c0_39 = arith.constant 0 : index
      %c128 = arith.constant 128 : index
      %67 = vector.load %arg4[%c0_38, %c0_39, %c128] : memref<1x16x256xf32, #tpu.memory_space<vmem>>, vector<1x16x128xf32>
      %68 = vector.shape_cast %67 : vector<1x16x128xf32> to vector<16x128xf32>
      %cst_40 = arith.constant 0.0883883461 : f32
      %69 = vector.broadcast %cst_40 : f32 to vector<16x128xf32>
      %70 = arith.mulf %68, %69 : vector<16x128xf32>
      %cst_41 = arith.constant dense<0.000000e+00> : vector<16x16xf32>
      %71 = tpu.matmul %70, %19, %cst_41 {dimension_numbers = #tpu.dot_dimension_numbers<[1], [1], [0], [0], [0, 0, 1, 0], [], []>} : vector<16x128xf32>, vector<16x128xf32>, vector<16x16xf32> -> vector<16x16xf32>
      %cst_42 = arith.constant 0xFF800000 : f32
      %72 = vector.broadcast %cst_42 : f32 to vector<16x16xf32>
      %73 = arith.select %28, %71, %72 : vector<16x16xi1>, vector<16x16xf32>
      %c1 = arith.constant 1 : index
      %c0_43 = arith.constant 0 : index
      %c0_44 = arith.constant 0 : index
      %74 = vector.load %arg8[%c1, %c0_43, %c0_44] : memref<2x16x1xf32, #tpu.memory_space<vmem>>, vector<1x16x1xf32>
      %75 = vector.shape_cast %74 : vector<1x16x1xf32> to vector<16x1xf32>
      %cst_45 = arith.constant dense<0xFF800000> : vector<16xf32>
      %76 = vector.multi_reduction <maximumf>, %73, %cst_45 [1] : vector<16x16xf32> to vector<16xf32>
      %77 = vector.shape_cast %76 : vector<16xf32> to vector<16x1xf32>
      %78 = arith.maximumf %75, %77 : vector<16x1xf32>
      %79 = arith.subf %75, %78 : vector<16x1xf32>
      %80 = math.exp %79 : vector<16x1xf32>
      %81 = vector.broadcast %78 : vector<16x1xf32> to vector<16x16xf32>
      %82 = arith.subf %73, %81 : vector<16x16xf32>
      %83 = math.exp %82 : vector<16x16xf32>
      %c1_46 = arith.constant 1 : index
      %c0_47 = arith.constant 0 : index
      %c0_48 = arith.constant 0 : index
      %84 = vector.load %arg9[%c1_46, %c0_47, %c0_48] : memref<2x16x1xf32, #tpu.memory_space<vmem>>, vector<1x16x1xf32>
      %85 = vector.shape_cast %84 : vector<1x16x1xf32> to vector<16x1xf32>
      %86 = arith.mulf %80, %85 : vector<16x1xf32>
      %cst_49 = arith.constant dense<0.000000e+00> : vector<16xf32>
      %87 = vector.multi_reduction <add>, %83, %cst_49 [1] : vector<16x16xf32> to vector<16xf32>
      %88 = vector.shape_cast %87 : vector<16xf32> to vector<16x1xf32>
      %89 = arith.addf %86, %88 : vector<16x1xf32>
      %c1_50 = arith.constant 1 : index
      %c0_51 = arith.constant 0 : index
      %c0_52 = arith.constant 0 : index
      %90 = vector.load %arg9[%c1_50, %c0_51, %c0_52] : memref<2x16x1xf32, #tpu.memory_space<vmem>>, vector<1x16x1xf32>
      %91 = vector.shape_cast %90 : vector<1x16x1xf32> to vector<16x1xf32>
      %92 = vector.shape_cast %89 : vector<16x1xf32> to vector<1x16x1xf32>
      tpu.vector_store %arg9[%c1_50, %c0_51, %c0_52], %92 {strides = array<i32>} : memref<2x16x1xf32, #tpu.memory_space<vmem>>, vector<1x16x1xf32>,
      %c1_53 = arith.constant 1 : index
      %c0_54 = arith.constant 0 : index
      %c0_55 = arith.constant 0 : index
      %93 = vector.load %arg10[%c1_53, %c0_54, %c0_55] : memref<2x16x128xf32, #tpu.memory_space<vmem>>, vector<1x16x128xf32>
      %94 = vector.shape_cast %93 : vector<1x16x128xf32> to vector<16x128xf32>
      %95 = vector.broadcast %80 : vector<16x1xf32> to vector<16x128xf32>
      %96 = arith.mulf %95, %94 : vector<16x128xf32>
      %cst_56 = arith.constant dense<0.000000e+00> : vector<16x128xf32>
      %97 = tpu.matmul %83, %21, %cst_56 {dimension_numbers = #tpu.dot_dimension_numbers<[1], [0], [0], [1], [0, 0, 1, 1], [], []>} : vector<16x16xf32>, vector<16x128xf32>, vector<16x128xf32> -> vector<16x128xf32>
      %98 = arith.addf %96, %97 : vector<16x128xf32>
      %c1_57 = arith.constant 1 : index
      %c0_58 = arith.constant 0 : index
      %c0_59 = arith.constant 0 : index
      %99 = vector.load %arg10[%c1_57, %c0_58, %c0_59] : memref<2x16x128xf32, #tpu.memory_space<vmem>>, vector<1x16x128xf32>
      %100 = vector.shape_cast %99 : vector<1x16x128xf32> to vector<16x128xf32>
      %101 = vector.shape_cast %98 : vector<16x128xf32> to vector<1x16x128xf32>
      tpu.vector_store %arg10[%c1_57, %c0_58, %c0_59], %101 {strides = array<i32>} : memref<2x16x128xf32, #tpu.memory_space<vmem>>, vector<1x16x128xf32>,
      %c1_60 = arith.constant 1 : index
      %c0_61 = arith.constant 0 : index
      %c0_62 = arith.constant 0 : index
      %102 = vector.load %arg8[%c1_60, %c0_61, %c0_62] : memref<2x16x1xf32, #tpu.memory_space<vmem>>, vector<1x16x1xf32>
      %103 = vector.shape_cast %102 : vector<1x16x1xf32> to vector<16x1xf32>
      %104 = vector.shape_cast %78 : vector<16x1xf32> to vector<1x16x1xf32>
      tpu.vector_store %arg8[%c1_60, %c0_61, %c0_62], %104 {strides = array<i32>} : memref<2x16x1xf32, #tpu.memory_space<vmem>>, vector<1x16x1xf32>,
    } else {
    }
    %c0_i32_5 = arith.constant 0 : i32
    %15 = arith.cmpi eq, %arg3, %c0_i32_5 : i32
    %16 = arith.extui %15 : i1 to i32
    %c0_i32_6 = arith.constant 0 : i32
    %17 = arith.cmpi ne, %16, %c0_i32_6 : i32
    scf.if %17 {
      %c0 = arith.constant 0 : index
      %c0_7 = arith.constant 0 : index
      %c0_8 = arith.constant 0 : index
      %18 = vector.load %arg9[%c0, %c0_7, %c0_8] : memref<2x16x1xf32, #tpu.memory_space<vmem>>, vector<1x16x1xf32>
      %19 = vector.shape_cast %18 : vector<1x16x1xf32> to vector<16x1xf32>
      %20 = tpu.reciprocal %19 {approx = true} : vector<16x1xf32> -> vector<16x1xf32>
      %c0_9 = arith.constant 0 : index
      %c0_10 = arith.constant 0 : index
      %c0_11 = arith.constant 0 : index
      %21 = vector.load %arg10[%c0_9, %c0_10, %c0_11] : memref<2x16x128xf32, #tpu.memory_space<vmem>>, vector<1x16x128xf32>
      %22 = vector.shape_cast %21 : vector<1x16x128xf32> to vector<16x128xf32>
      %23 = vector.broadcast %20 : vector<16x1xf32> to vector<16x128xf32>
      %24 = arith.mulf %22, %23 : vector<16x128xf32>
      %c0_12 = arith.constant 0 : index
      %c0_13 = arith.constant 0 : index
      %c0_14 = arith.constant 0 : index
      %25 = vector.load %arg7[%c0_12, %c0_13, %c0_14] : memref<1x16x256xf32, #tpu.memory_space<vmem>>, vector<1x16x128xf32>
      %26 = vector.shape_cast %25 : vector<1x16x128xf32> to vector<16x128xf32>
      %27 = vector.shape_cast %24 : vector<16x128xf32> to vector<1x16x128xf32>
      tpu.vector_store %arg7[%c0_12, %c0_13, %c0_14], %27 {strides = array<i32>} : memref<1x16x256xf32, #tpu.memory_space<vmem>>, vector<1x16x128xf32>,
      %c1 = arith.constant 1 : index
      %c0_15 = arith.constant 0 : index
      %c0_16 = arith.constant 0 : index
      %28 = vector.load %arg9[%c1, %c0_15, %c0_16] : memref<2x16x1xf32, #tpu.memory_space<vmem>>, vector<1x16x1xf32>
      %29 = vector.shape_cast %28 : vector<1x16x1xf32> to vector<16x1xf32>
      %30 = tpu.reciprocal %29 {approx = true} : vector<16x1xf32> -> vector<16x1xf32>
      %c1_17 = arith.constant 1 : index
      %c0_18 = arith.constant 0 : index
      %c0_19 = arith.constant 0 : index
      %31 = vector.load %arg10[%c1_17, %c0_18, %c0_19] : memref<2x16x128xf32, #tpu.memory_space<vmem>>, vector<1x16x128xf32>
      %32 = vector.shape_cast %31 : vector<1x16x128xf32> to vector<16x128xf32>
      %33 = vector.broadcast %30 : vector<16x1xf32> to vector<16x128xf32>
      %34 = arith.mulf %32, %33 : vector<16x128xf32>
      %c0_20 = arith.constant 0 : index
      %c0_21 = arith.constant 0 : index
      %c128 = arith.constant 128 : index
      %35 = vector.load %arg7[%c0_20, %c0_21, %c128] : memref<1x16x256xf32, #tpu.memory_space<vmem>>, vector<1x16x128xf32>
      %36 = vector.shape_cast %35 : vector<1x16x128xf32> to vector<16x128xf32>
      %37 = vector.shape_cast %34 : vector<16x128xf32> to vector<1x16x128xf32>
      tpu.vector_store %arg7[%c0_20, %c0_21, %c128], %37 {strides = array<i32>} : memref<1x16x256xf32, #tpu.memory_space<vmem>>, vector<1x16x128xf32>,
    } else {
    }
    return
  }
  func.func @transform_0(%arg0: i32, %arg1: i32, %arg2: i32, %arg3: i32) -> (i32, i32, i32) {
    %c0_i32 = arith.constant 0 : i32
    return %arg0, %arg2, %arg1 : i32, i32, i32
  }
  func.func @transform_1(%arg0: i32, %arg1: i32, %arg2: i32, %arg3: i32) -> (i32, i32, i32) {
    %c0_i32 = arith.constant 0 : i32
    return %arg0, %arg3, %arg1 : i32, i32, i32
  }
  func.func @transform_2(%arg0: i32, %arg1: i32, %arg2: i32, %arg3: i32) -> (i32, i32, i32) {
    %c0_i32 = arith.constant 0 : i32
    return %arg0, %arg3, %arg1 : i32, i32, i32
  }
  func.func @transform_3(%arg0: i32, %arg1: i32, %arg2: i32, %arg3: i32) -> (i32, i32, i32) {
    %c0_i32 = arith.constant 0 : i32
    return %arg0, %arg2, %arg1 : i32, i32, i32
  }
}

</mosaic_0001>

<llo_original>
// kernel: tpu_custom_call.1
$region0: #{tpu_custom_call.1}
  #allocation0 [shape = 'u32[]', space=smem, size = 0x4, offset = 0x4, fixed_abs, tag = 'smem constant byte address 0x4 - core index']
  #allocation1 [shape = 'u32[72,128]{1,0:T(1,128)}', space=vmem, size = 0x9000, scoped, tag = 'internal scratch']
  #allocation2 [shape = 'f32[2,16,1]{2,1,0:T(8,128)}', space=vmem, size = 0x4000, scoped, tag = 'scratch operand']
  #allocation3 [shape = 'f32[2,16,1]{2,1,0:T(8,128)}', space=vmem, size = 0x4000, scoped, tag = 'scratch operand']
  #allocation4 [shape = 'f32[2,16,128]{2,1,0:T(8,128)}', space=vmem, size = 0x4000, scoped, tag = 'scratch operand']
  %s0 = inlined_call_operand.hbm [shape: f32[2,16,512], index: 0, kind: input, shape index: {}]
  %s1 = inlined_call_operand.hbm [shape: f32[2,16,256], index: 1, kind: input, shape index: {}]
  %s2 = inlined_call_operand.hbm [shape: f32[2,16,256], index: 2, kind: input, shape index: {}]
  %s3 = inlined_call_operand.hbm [shape: f32[2,16,512], index: 3, kind: output, shape index: {}]
  %s4 = sld [smem:[#allocation0]]
  $region73: #{tpu_custom_call.1} parent=0
    _
  %s6 = ssub.s32 1, %s4
  %s7 = scalar_select 0, %s6, %s4
  $region1: #{tpu_custom_call.1} parent=0
    #allocation5 [shape = 'u8[32768]{0}', space=vmem, size = 0x8000, scoped, tag = 'input window, operand 0']
    #allocation6 [shape = 's32[2]{0}', space=sflag, size = 0x8, scoped, tag = 'scoped memory for tpu_custom_call.1']
    #allocation7 [shape = 's32[2]{0}', space=sflag, size = 0x8, scoped, tag = 'scoped memory for tpu_custom_call.1']
    #allocation8 [shape = 'u8[16384]{0}', space=vmem, size = 0x4000, scoped, tag = 'input window, operand 1']
    #allocation9 [shape = 's32[2]{0}', space=sflag, size = 0x8, scoped, tag = 'scoped memory for tpu_custom_call.1']
    #allocation10 [shape = 'u8[16384]{0}', space=vmem, size = 0x4000, scoped, tag = 'input window, operand 2']
    #allocation11 [shape = 'u8[32768]{0}', space=vmem, size = 0x8000, scoped, tag = 'output window, operand 0']
    %8 = vsyncpa [#allocation6], 0
    %s9 = scalar_lea.sflag [#allocation6], 1
    %10 = vsyncpa %s9, 0
    %11 = vsyncpa [#allocation9], 0
    %s12 = scalar_lea.sflag [#allocation9], 1
    %13 = vsyncpa %s12, 0
    %14 = vsyncpa [#allocation7], 0
    %s15 = scalar_lea.sflag [#allocation7], 1
    %16 = vsyncpa %s15, 0
    loop: start=0, step=1, limit=6
    $region2: #{tpu_custom_call.1} parent=1 // loop_pre_header
      _
    $region3: #{tpu_custom_call.1} parent=1 // loop_header
      %s18 = sphi 0, %s22
      %p19 = scmp.ge.s32.totalorder %s18, 6
      %s25 = sphi 0, %s51
      %s26 = sphi 0, %s47
      %s27 = sphi 0, %s43
      %s28 = sphi 0, %s39
      %s29 = sphi 0, %s25
      %s30 = sphi 0, %s26
      %s31 = sphi 0, %s27
      %s32 = sphi 0, %s28
      %s33 = sphi 0, %s29
      %s34 = sphi 0, %s30
      %s35 = sphi 0, %s31
      %s36 = sphi 0, %s32
      %s58 = sphi 0, %s60
      %s61 = sphi 0, %s58
      %s62 = sphi 0, %s61
      %s78 = sphi 0, %s62
      %s88 = sphi 0, %s90
      %s91 = sphi 0, %s88
      %s92 = sphi 0, %s91
      %s108 = sphi 0, %s92
      %s118 = sphi 0, %s120
      %s121 = sphi 0, %s118
      %s122 = sphi 0, %s121
      %s138 = sphi 0, %s122
      %s148 = sphi 0, %s150
      %s151 = sphi 0, %s148
      %s152 = sphi 0, %s151
      %s168 = sphi 0, %s152
    $region4: #{tpu_custom_call.1} parent=1 // loop_header_branch
      %21 = sbr.rel (%p19) target = $region8
    $region5: #{tpu_custom_call.1} parent=1 // loop_body
      %s23 = ssub.s32 %s18, 1
      %s24 = ssub.s32 %s18, 2
      %s37 = sadd.s32 1, %s28
      %p38 = scmp.ge.s32.totalorder %s37, 1
      %s39 = scalar_select %p38, 0, %s37
      %s40 = sadd.s32 1, %s27
      %s41 = scalar_select %p38, %s40, %s27
      %p42 = scmp.ge.s32.totalorder %s41, 1
      %s43 = scalar_select %p42, 0, %s41
      %s44 = sadd.s32 1, %s26
      %s45 = scalar_select %p42, %s44, %s26
      %p46 = scmp.ge.s32.totalorder %s45, 2
      %s47 = scalar_select %p46, 0, %s45
      %s48 = sadd.s32 1, %s25
      %s49 = scalar_select %p46, %s48, %s25
      %p50 = scmp.ge.s32.totalorder %s49, 2
      %s51 = scalar_select %p50, 0, %s49
      %s52 = ssub.s32 %s25, %s51
      %s53 = ssub.s32 %s27, %s43
      %s54 = sor.u32 %s52, %s53
      %s55 = ssub.s32 %s26, %s47
      %s56 = sor.u32 %s54, %s55
      %p57 = scmp.eq.s32.totalorder %s56, 0
      %s59 = sadd.s32 %s58, 1
      %s60 = scalar_select %p57, %s58, %s59
      %p63 = pneg %p57
      %p64 = scmp.eq.s32.totalorder %s18, 3
      %p65 = por %p63, %p64
      %p66 = scmp.ne.s32.totalorder %s58, %s61
      %p67 = scmp.eq.s32.totalorder %s18, 0
      %p68 = por %p66, %p67
      %p69 = scmp.ne.s32.totalorder %s58, %s61
      %p70 = scmp.eq.s32.totalorder %s23, 3
      %p71 = por %p69, %p70
      %p72 = scmp.ne.s32.totalorder %s61, %s62
      %p73 = scmp.eq.s32.totalorder %s23, 0
      %p74 = por %p72, %p73
      %p75 = scmp.ne.s32.totalorder %s61, %s62
      %p76 = scmp.eq.s32.totalorder %s24, 3
      %p77 = por %p75, %p76
      %p79 = scmp.ne.s32.totalorder %s62, %s78
      %p80 = scmp.eq.s32.totalorder %s24, 0
      %p81 = por %p79, %p80
      %s82 = ssub.s32 %s25, %s51
      %s83 = ssub.s32 %s28, %s39
      %s84 = sor.u32 %s82, %s83
      %s85 = ssub.s32 %s26, %s47
      %s86 = sor.u32 %s84, %s85
      %p87 = scmp.eq.s32.totalorder %s86, 0
      %s89 = sadd.s32 %s88, 1
      %s90 = scalar_select %p87, %s88, %s89
      %p93 = pneg %p87
      %p94 = scmp.eq.s32.totalorder %s18, 3
      %p95 = por %p93, %p94
      %p96 = scmp.ne.s32.totalorder %s88, %s91
      %p97 = scmp.eq.s32.totalorder %s18, 0
      %p98 = por %p96, %p97
      %p99 = scmp.ne.s32.totalorder %s88, %s91
      %p100 = scmp.eq.s32.totalorder %s23, 3
      %p101 = por %p99, %p100
      %p102 = scmp.ne.s32.totalorder %s91, %s92
      %p103 = scmp.eq.s32.totalorder %s23, 0
      %p104 = por %p102, %p103
      %p105 = scmp.ne.s32.totalorder %s91, %s92
      %p106 = scmp.eq.s32.totalorder %s24, 3
      %p107 = por %p105, %p106
      %p109 = scmp.ne.s32.totalorder %s92, %s108
      %p110 = scmp.eq.s32.totalorder %s24, 0
      %p111 = por %p109, %p110
      %s112 = ssub.s32 %s25, %s51
      %s113 = ssub.s32 %s28, %s39
      %s114 = sor.u32 %s112, %s113
      %s115 = ssub.s32 %s26, %s47
      %s116 = sor.u32 %s114, %s115
      %p117 = scmp.eq.s32.totalorder %s116, 0
      %s119 = sadd.s32 %s118, 1
      %s120 = scalar_select %p117, %s118, %s119
      %p123 = pneg %p117
      %p124 = scmp.eq.s32.totalorder %s18, 3
      %p125 = por %p123, %p124
      %p126 = scmp.ne.s32.totalorder %s118, %s121
      %p127 = scmp.eq.s32.totalorder %s18, 0
      %p128 = por %p126, %p127
      %p129 = scmp.ne.s32.totalorder %s118, %s121
      %p130 = scmp.eq.s32.totalorder %s23, 3
      %p131 = por %p129, %p130
      %p132 = scmp.ne.s32.totalorder %s121, %s122
      %p133 = scmp.eq.s32.totalorder %s23, 0
      %p134 = por %p132, %p133
      %p135 = scmp.ne.s32.totalorder %s121, %s122
      %p136 = scmp.eq.s32.totalorder %s24, 3
      %p137 = por %p135, %p136
      %p139 = scmp.ne.s32.totalorder %s122, %s138
      %p140 = scmp.eq.s32.totalorder %s24, 0
      %p141 = por %p139, %p140
      %s142 = ssub.s32 %s25, %s51
      %s143 = ssub.s32 %s27, %s43
      %s144 = sor.u32 %s142, %s143
      %s145 = ssub.s32 %s26, %s47
      %s146 = sor.u32 %s144, %s145
      %p147 = scmp.eq.s32.totalorder %s146, 0
      %s149 = sadd.s32 %s148, 1
      %s150 = scalar_select %p147, %s148, %s149
      %p153 = pneg %p147
      %p154 = scmp.eq.s32.totalorder %s18, 3
      %p155 = por %p153, %p154
      %p156 = scmp.ne.s32.totalorder %s148, %s151
      %p157 = scmp.eq.s32.totalorder %s18, 0
      %p158 = por %p156, %p157
      %p159 = scmp.ne.s32.totalorder %s148, %s151
      %p160 = scmp.eq.s32.totalorder %s23, 3
      %p161 = por %p159, %p160
      %p162 = scmp.ne.s32.totalorder %s151, %s152
      %p163 = scmp.eq.s32.totalorder %s23, 0
      %p164 = por %p162, %p163
      %p165 = scmp.ne.s32.totalorder %s151, %s152
      %p166 = scmp.eq.s32.totalorder %s24, 3
      %p167 = por %p165, %p166
      %p169 = scmp.ne.s32.totalorder %s152, %s168
      %p170 = scmp.eq.s32.totalorder %s24, 0
      %p171 = por %p169, %p170
      %p172 = scmp.le.s32.totalorder 1, %s18
      %p173 = scmp.lt.s32.totalorder %s18, 5
      %p174 = pnand %p172, %p173
      %p175 = pneg %p174
      // Predicated region
      $region9: #{tpu_custom_call.1} parent=5 // pred_check
        _
      $region10: #{tpu_custom_call.1} parent=5 // pred_check_branch
        %177 = sbr.rel (%p174) target = $region12
      $region11: #{tpu_custom_call.1} parent=5 // pred_region
        %s178 = ssub.s32 %s18, 1
      $region12: #{tpu_custom_call.1} parent=5 // pred_fallthru
        _
      %p179 = scmp.lt.s32.totalorder %s18, 4
      // Predicated region
      $region13: #{tpu_custom_call.1} parent=5 // pred_check
        %p180 = pneg %p179
      $region14: #{tpu_custom_call.1} parent=5 // pred_check_branch
        %182 = sbr.rel (%p180) target = $region16
      $region15: #{tpu_custom_call.1} parent=5 // pred_region
        // Predicated region
        $region17: #{tpu_custom_call.1} parent=15 // pred_check
          %p183 = pneg %p68
        $region18: #{tpu_custom_call.1} parent=15 // pred_check_branch
          %185 = sbr.rel (%p183) target = $region20
        $region19: #{tpu_custom_call.1} parent=15 // pred_region
          %s186 = sand.u32 %s58, 1
          %s187 = scalar_lea.sflag [#allocation6], %s186
          %s188 = sand.u32 %s58, 1
          %s189 = smul.addr %s188, 32
          %s190 = scalar_lea.vmem [#allocation5], %s189
          %s191 = smul.u32 2, %s27
          %s192 = smul.u32 2, %s26
          %194 = vsyncadd %s187, 0
          %s195 = smul.addr %s191, 4
          %s196 = sadd.s32 %s192, %s195
          %s197 = smul.addr %s25, 8
          %s198 = sadd.s32 %s196, %s197
          %s199 = smul.addr %s198, 8
          %s200 = scalar_lea.hbm %s0, %s199
          %s201 = sshll.u32 %s200, 4
          %s202 = int_to_ptr.hbm [resolvable:$true] %s201
          %s203 = sshll.u32 %s190, 4
          %s204 = int_to_ptr.vmem [resolvable:$true] %s203
          %209 = dma.hbm_to_vmem [thread:$0]  %s202, 512, %s204, %s187, 512, 256, 16
        $region20: #{tpu_custom_call.1} parent=15 // pred_fallthru
          _
        // Predicated region
        $region21: #{tpu_custom_call.1} parent=15 // pred_check
          %p210 = pneg %p98
        $region22: #{tpu_custom_call.1} parent=15 // pred_check_branch
          %212 = sbr.rel (%p210) target = $region24
        $region23: #{tpu_custom_call.1} parent=15 // pred_region
          %s213 = sand.u32 %s18, 1
          %s214 = scalar_lea.sflag [#allocation9], %s213
          %s215 = sand.u32 %s88, 1
          %s216 = smul.addr %s215, 16
          %s217 = scalar_lea.vmem [#allocation8], %s216
          %s218 = smul.u32 2, %s28
          %220 = vsyncadd %s214, 0
          %s221 = smul.addr %s218, 2
          %s222 = sadd.s32 %s26, %s221
          %s223 = smul.addr %s25, 4
          %s224 = sadd.s32 %s222, %s223
          %s225 = smul.addr %s224, 8
          %s226 = scalar_lea.hbm %s1, %s225
          %s227 = sshll.u32 %s226, 4
          %s228 = int_to_ptr.hbm [resolvable:$true] %s227
          %s229 = sshll.u32 %s217, 4
          %s230 = int_to_ptr.vmem [resolvable:$true] %s229
          %235 = dma.hbm_to_vmem [thread:$0]  %s228, 256, %s230, %s214, 256, 128, 8
        $region24: #{tpu_custom_call.1} parent=15 // pred_fallthru
          _
        // Predicated region
        $region25: #{tpu_custom_call.1} parent=15 // pred_check
          %p236 = pneg %p128
        $region26: #{tpu_custom_call.1} parent=15 // pred_check_branch
          %238 = sbr.rel (%p236) target = $region28
        $region27: #{tpu_custom_call.1} parent=15 // pred_region
          %s239 = sand.u32 %s18, 1
          %s240 = scalar_lea.sflag [#allocation9], %s239
          %s241 = sand.u32 %s118, 1
          %s242 = smul.addr %s241, 16
          %s243 = scalar_lea.vmem [#allocation10], %s242
          %s244 = smul.u32 2, %s28
          %246 = vsyncadd %s240, 0
          %s247 = smul.addr %s244, 2
          %s248 = sadd.s32 %s26, %s247
          %s249 = smul.addr %s25, 4
          %s250 = sadd.s32 %s248, %s249
          %s251 = smul.addr %s250, 8
          %s252 = scalar_lea.hbm %s2, %s251
          %s253 = sshll.u32 %s252, 4
          %s254 = int_to_ptr.hbm [resolvable:$true] %s253
          %s255 = sshll.u32 %s243, 4
          %s256 = int_to_ptr.vmem [resolvable:$true] %s255
          %261 = dma.hbm_to_vmem [thread:$0]  %s254, 256, %s256, %s240, 256, 128, 8
        $region28: #{tpu_custom_call.1} parent=15 // pred_fallthru
          _
      $region16: #{tpu_custom_call.1} parent=5 // pred_fallthru
        _
      %p262 = scmp.le.s32.totalorder 1, %s18
      %p263 = scmp.lt.s32.totalorder %s18, 5
      %p264 = pnand %p262, %p263
      %p265 = pneg %p264
      // Predicated region
      $region29: #{tpu_custom_call.1} parent=5 // pred_check
        _
      $region30: #{tpu_custom_call.1} parent=5 // pred_check_branch
        %267 = sbr.rel (%p264) target = $region32
      $region31: #{tpu_custom_call.1} parent=5 // pred_region
        %s268 = ssub.s32 %s18, 1
        %s269 = sand.u32 %s61, 1
        %s270 = scalar_lea.sflag [#allocation6], %s269
        %s271 = sand.u32 %s61, 1
        %s272 = smul.addr %s271, 32
        %s273 = scalar_lea.vmem [#allocation5], %s272
        // Predicated region
        $region33: #{tpu_custom_call.1} parent=31 // pred_check
          %p274 = pneg %p74
        $region34: #{tpu_custom_call.1} parent=31 // pred_check_branch
          %276 = sbr.rel (%p274) target = $region36
        $region35: #{tpu_custom_call.1} parent=31 // pred_region
          %278 = dma.done %s270, 512
        $region36: #{tpu_custom_call.1} parent=31 // pred_fallthru
          _
        %s279 = sand.u32 %s23, 1
        %s280 = scalar_lea.sflag [#allocation9], %s279
        %s281 = sand.u32 %s91, 1
        %s282 = smul.addr %s281, 16
        %s283 = scalar_lea.vmem [#allocation8], %s282
        // Predicated region
        $region37: #{tpu_custom_call.1} parent=31 // pred_check
          %p284 = pneg %p104
        $region38: #{tpu_custom_call.1} parent=31 // pred_check_branch
          %286 = sbr.rel (%p284) target = $region40
        $region39: #{tpu_custom_call.1} parent=31 // pred_region
          %288 = dma.done %s280, 256
        $region40: #{tpu_custom_call.1} parent=31 // pred_fallthru
          _
        %s289 = sand.u32 %s23, 1
        %s290 = scalar_lea.sflag [#allocation9], %s289
        %s291 = sand.u32 %s121, 1
        %s292 = smul.addr %s291, 16
        %s293 = scalar_lea.vmem [#allocation10], %s292
        // Predicated region
        $region41: #{tpu_custom_call.1} parent=31 // pred_check
          %p294 = pneg %p134
        $region42: #{tpu_custom_call.1} parent=31 // pred_check_branch
          %296 = sbr.rel (%p294) target = $region44
        $region43: #{tpu_custom_call.1} parent=31 // pred_region
          %298 = dma.done %s290, 256
        $region44: #{tpu_custom_call.1} parent=31 // pred_fallthru
          _
        %s299 = sand.u32 %s61, 1
        %s300 = scalar_lea.sflag [#allocation6], %s299
        %s301 = sand.u32 %s61, 1
        %s302 = smul.addr %s301, 32
        %s303 = scalar_lea.vmem [#allocation5], %s302
        %p304 = pneg %p74
        %p305 = pneg %p71
        %s306 = sand.u32 %s23, 1
        %s307 = scalar_lea.sflag [#allocation9], %s306
        %s308 = sand.u32 %s91, 1
        %s309 = smul.addr %s308, 16
        %s310 = scalar_lea.vmem [#allocation8], %s309
        %p311 = pneg %p104
        %p312 = pneg %p101
        %s313 = sand.u32 %s23, 1
        %s314 = scalar_lea.sflag [#allocation9], %s313
        %s315 = sand.u32 %s121, 1
        %s316 = smul.addr %s315, 16
        %s317 = scalar_lea.vmem [#allocation10], %s316
        %p318 = pneg %p134
        %p319 = pneg %p131
        %p320 = pneg %p164
        %p321 = pneg %p161
        %s322 = sand.u32 %s151, 1
        %s323 = scalar_lea.sflag [#allocation7], %s322
        %s324 = sand.u32 %s151, 1
        %s325 = smul.addr %s324, 32
        %s326 = scalar_lea.vmem [#allocation11], %s325
        %s327 = smul.u32 2, %s31
        %s328 = smul.u32 2, %s30
        %s329 = smul.u32 2, %s32
        %s330 = smul.u32 2, %s32
        %s331 = smul.u32 2, %s31
        %s332 = smul.u32 2, %s30
        %s333 = smul.u32 %s31, 16
        %s334 = smul.u32 %s32, 16
        %p335 = scmp.eq.s32.totalorder %s32, 0
        // Predicated region
        $region45: #{tpu_custom_call.1} parent=31 // pred_check
          %p336 = pneg %p335
        $region46: #{tpu_custom_call.1} parent=31 // pred_check_branch
          %338 = sbr.rel (%p336) target = $region48
        $region47: #{tpu_custom_call.1} parent=31 // pred_region
          %vm339 = vcmask 7168
          %340 = vst.msk [vmem:[#allocation2] sm:$0xff] %vm339, -inf
          %341 = vst.msk [vmem:[#allocation2 + $0x8] sm:$0xff] %vm339, -inf
          %342 = vst.msk [vmem:[#allocation2 + $0x10] sm:$0xff] %vm339, -inf
          %343 = vst.msk [vmem:[#allocation2 + $0x18] sm:$0xff] %vm339, -inf
          %344 = vst.msk [vmem:[#allocation3] sm:$0xff] %vm339, 0.0
          %345 = vst.msk [vmem:[#allocation3 + $0x8] sm:$0xff] %vm339, 0.0
          %346 = vst.msk [vmem:[#allocation3 + $0x10] sm:$0xff] %vm339, 0.0
          %347 = vst.msk [vmem:[#allocation3 + $0x18] sm:$0xff] %vm339, 0.0
          %348 = vst [vmem:[#allocation4] sm:$0xff] 0.0
          %349 = vst [vmem:[#allocation4 + $0x8] sm:$0xff] 0.0
          %350 = vst [vmem:[#allocation4 + $0x10] sm:$0xff] 0.0
          %351 = vst [vmem:[#allocation4 + $0x18] sm:$0xff] 0.0
        $region48: #{tpu_custom_call.1} parent=31 // pred_fallthru
          _
        %s352 = sadd.s32 %s333, 15
        %p353 = scmp.le.s32.totalorder %s334, %s352
        %s354 = sadd.s32 %s334, 15
        %p355 = scmp.le.s32.totalorder %s354, %s333
        // Predicated region
        $region49: #{tpu_custom_call.1} parent=31 // pred_check
          %p356 = pneg %p355
        $region50: #{tpu_custom_call.1} parent=31 // pred_check_branch
          %358 = sbr.rel (%p356) target = $region52
        $region51: #{tpu_custom_call.1} parent=31 // pred_region
          %v359 = vld [vmem:[%s283] sm:$0xff]
          %v360 = vld [vmem:[%s283 + $0x8] sm:$0xff]
          %v361 = vld [vmem:[%s293] sm:$0xff]
          %v362 = vld [vmem:[%s293 + $0x8] sm:$0xff]
          %v363 = vld [vmem:[%s273] sm:$0xff]
          %v364 = vld [vmem:[%s273 + $0x10] sm:$0xff]
          %v365 = vmul.f32 %v363, 0.088388346
          %v366 = vmul.f32 %v364, 0.088388346
          %367 = vmatpush.xpose.msra.mxu0 0.0
          %368 = vmatpush.xpose.msra.mxu0 0.0
          %369 = vmatpush.xpose.msra.mxu0 0.0
          %370 = vmatpush.xpose.msra.mxu0 0.0
          %371 = vmatpush.xpose.msra.mxu0 0.0
          %372 = vmatpush.xpose.msra.mxu0 0.0
          %373 = vmatpush.xpose.msra.mxu0 0.0
          %374 = vmatpush.xpose.msra.mxu0 0.0
          %375 = vmatpush.xpose.msra.mxu0 0.0
          %376 = vmatpush.xpose.msra.mxu0 0.0
          %377 = vmatpush.xpose.msra.mxu0 0.0
          %378 = vmatpush.xpose.msra.mxu0 0.0
          %379 = vmatpush.xpose.msra.mxu0 0.0
          %380 = vmatpush.xpose.msra.mxu0 0.0
          %381 = vmatpush.xpose.msra.mxu0 %v360
          %382 = vmatpush.xpose.msra.mxu0 %v359
          %383 = vmatmul.f32.gmra.mxu0 %v365
          %v384 = vpop.f32.mrf.mxu0
          %v385 = vadd.f32 0.0, %v384
          %386 = vmatmul.f32.gmra.mxu0 %v366
          %v387 = vpop.f32.mrf.mxu0
          %v388 = vadd.f32 0.0, %v387
          %389 = vdwg.mxu0
          %v390 = vld [vmem:[#allocation2] sm:$0xff]
          %v391 = vld [vmem:[#allocation2 + $0x8] sm:$0xff]
          %vm392 = vcmask 130048
          %v393 = vsel %vm392, %v385, -inf
          %394 = vmax.xlane.f32.xlu0 %v393
          %v395 = vpop.xlane.xlu0 %394
          %v396 = vsel %vm392, %v388, -inf
          %397 = vmax.xlane.f32.xlu0 %v396
          %v398 = vpop.xlane.xlu0 %397
          %v399 = vmax.f32 %v390, %v395
          %v400 = vmax.f32 %v391, %v398
          %v401 = vsub.f32 %v390, %v399
          %v402 = vsub.f32 %v391, %v400
          %v403 = vmul.f32 %v401, 1.442695
          %v404 = vpow.pop %v403
          %v405 = vmul.f32 %v402, 1.442695
          %v406 = vpow.pop %v405
          %408 = vset.pattern.permute.xlu0 0
          %409 = vperm.xlu0 %408, %v399
          %v410 = vpop.permute.xlu0 %409
          %413 = vset.pattern.permute.xlu0 0
          %414 = vperm.xlu0 %413, %v400
          %v415 = vpop.permute.xlu0 %414
          %v417 = vsub.f32 %v385, %v410
          %v418 = vsub.f32 %v388, %v415
          %v419 = vmul.f32 %v417, 1.442695
          %v420 = vpow.pop %v419
          %v421 = vmul.f32 %v418, 1.442695
          %v422 = vpow.pop %v421
          %v423 = vld [vmem:[#allocation3] sm:$0xff]
          %v424 = vld [vmem:[#allocation3 + $0x8] sm:$0xff]
          %v425 = vmul.f32 %v404, %v423
          %v426 = vmul.f32 %v406, %v424
          %v427 = vsel %vm392, %v420, 0.0
          %428 = vadd.xlane.f32.xlu0 %v427
          %v429 = vpop.xlane.xlu0 %428
          %v430 = vsel %vm392, %v422, 0.0
          %431 = vadd.xlane.f32.xlu0 %v430
          %v432 = vpop.xlane.xlu0 %431
          %v433 = vadd.f32 %v425, %v429
          %v434 = vadd.f32 %v426, %v432
          %vm435 = vcmask 7168
          %436 = vst.msk [vmem:[#allocation3] sm:$0xff] %vm435, %v433
          %437 = vst.msk [vmem:[#allocation3 + $0x8] sm:$0xff] %vm435, %v434
          %v438 = vld [vmem:[#allocation4] sm:$0xff]
          %v439 = vld [vmem:[#allocation4 + $0x8] sm:$0xff]
          %441 = vset.pattern.permute.xlu0 0
          %442 = vperm.xlu0 %441, %v404
          %v443 = vpop.permute.xlu0 %442
          %446 = vset.pattern.permute.xlu0 0
          %447 = vperm.xlu0 %446, %v406
          %v448 = vpop.permute.xlu0 %447
          %v450 = vmul.f32 %v443, %v438
          %v451 = vmul.f32 %v448, %v439
          %v453 = vsel %vm392, %v420, 0
          %v456 = vsel %vm392, %v422, 0
          %458 = vmatpush.msra.mxu0 0.0
          %459 = vmatpush.msra.mxu0 0.0
          %460 = vmatpush.msra.mxu0 0.0
          %461 = vmatpush.msra.mxu0 0.0
          %462 = vmatpush.msra.mxu0 0.0
          %463 = vmatpush.msra.mxu0 0.0
          %464 = vmatpush.msra.mxu0 0.0
          %465 = vmatpush.msra.mxu0 0.0
          %466 = vmatpush.msra.mxu0 0.0
          %467 = vmatpush.msra.mxu0 0.0
          %468 = vmatpush.msra.mxu0 0.0
          %469 = vmatpush.msra.mxu0 0.0
          %470 = vmatpush.msra.mxu0 0.0
          %471 = vmatpush.msra.mxu0 0.0
          %472 = vmatpush.msra.mxu0 %v362
          %473 = vmatpush.msra.mxu0 %v361
          %474 = vmatmul.f32.gmra.mxu0 %v453
          %v475 = vpop.f32.mrf.mxu0
          %v476 = vadd.f32 0.0, %v475
          %477 = vmatmul.f32.gmra.mxu0 %v456
          %v478 = vpop.f32.mrf.mxu0
          %v479 = vadd.f32 0.0, %v478
          %480 = vdwg.mxu0
          %v481 = vadd.f32 %v450, %v476
          %v482 = vadd.f32 %v451, %v479
          %483 = vst [vmem:[#allocation4] sm:$0xff] %v481
          %484 = vst [vmem:[#allocation4 + $0x8] sm:$0xff] %v482
          %485 = vst.msk [vmem:[#allocation2] sm:$0xff] %vm435, %v399
          %486 = vst.msk [vmem:[#allocation2 + $0x8] sm:$0xff] %vm435, %v400
          %v487 = vld [vmem:[%s273 + $0x8] sm:$0xff]
          %v488 = vld [vmem:[%s273 + $0x18] sm:$0xff]
          %v489 = vmul.f32 %v487, 0.088388346
          %v490 = vmul.f32 %v488, 0.088388346
          %491 = vmatpush.xpose.msra.mxu0 0.0
          %492 = vmatpush.xpose.msra.mxu0 0.0
          %493 = vmatpush.xpose.msra.mxu0 0.0
          %494 = vmatpush.xpose.msra.mxu0 0.0
          %495 = vmatpush.xpose.msra.mxu0 0.0
          %496 = vmatpush.xpose.msra.mxu0 0.0
          %497 = vmatpush.xpose.msra.mxu0 0.0
          %498 = vmatpush.xpose.msra.mxu0 0.0
          %499 = vmatpush.xpose.msra.mxu0 0.0
          %500 = vmatpush.xpose.msra.mxu0 0.0
          %501 = vmatpush.xpose.msra.mxu0 0.0
          %502 = vmatpush.xpose.msra.mxu0 0.0
          %503 = vmatpush.xpose.msra.mxu0 0.0
          %504 = vmatpush.xpose.msra.mxu0 0.0
          %505 = vmatpush.xpose.msra.mxu0 %v360
          %506 = vmatpush.xpose.msra.mxu0 %v359
          %507 = vmatmul.f32.gmra.mxu0 %v489
          %v508 = vpop.f32.mrf.mxu0
          %v509 = vadd.f32 0.0, %v508
          %510 = vmatmul.f32.gmra.mxu0 %v490
          %v511 = vpop.f32.mrf.mxu0
          %v512 = vadd.f32 0.0, %v511
          %513 = vdwg.mxu0
          %s514 = scalar_lea.vmem [#allocation2], 16
          %v515 = vld [vmem:[%s514] sm:$0xff]
          %v516 = vld [vmem:[%s514 + $0x8] sm:$0xff]
          %v517 = vsel %vm392, %v509, -inf
          %518 = vmax.xlane.f32.xlu0 %v517
          %v519 = vpop.xlane.xlu0 %518
          %v520 = vsel %vm392, %v512, -inf
          %521 = vmax.xlane.f32.xlu0 %v520
          %v522 = vpop.xlane.xlu0 %521
          %v523 = vmax.f32 %v515, %v519
          %v524 = vmax.f32 %v516, %v522
          %v525 = vsub.f32 %v515, %v523
          %v526 = vsub.f32 %v516, %v524
          %v527 = vmul.f32 %v525, 1.442695
          %v528 = vpow.pop %v527
          %v529 = vmul.f32 %v526, 1.442695
          %v530 = vpow.pop %v529
          %532 = vset.pattern.permute.xlu0 0
          %533 = vperm.xlu0 %532, %v523
          %v534 = vpop.permute.xlu0 %533
          %537 = vset.pattern.permute.xlu0 0
          %538 = vperm.xlu0 %537, %v524
          %v539 = vpop.permute.xlu0 %538
          %v541 = vsub.f32 %v509, %v534
          %v542 = vsub.f32 %v512, %v539
          %v543 = vmul.f32 %v541, 1.442695
          %v544 = vpow.pop %v543
          %v545 = vmul.f32 %v542, 1.442695
          %v546 = vpow.pop %v545
          %s547 = scalar_lea.vmem [#allocation3], 16
          %v548 = vld [vmem:[%s547] sm:$0xff]
          %v549 = vld [vmem:[%s547 + $0x8] sm:$0xff]
          %v550 = vmul.f32 %v528, %v548
          %v551 = vmul.f32 %v530, %v549
          %v552 = vsel %vm392, %v544, 0.0
          %553 = vadd.xlane.f32.xlu0 %v552
          %v554 = vpop.xlane.xlu0 %553
          %v555 = vsel %vm392, %v546, 0.0
          %556 = vadd.xlane.f32.xlu0 %v555
          %v557 = vpop.xlane.xlu0 %556
          %v558 = vadd.f32 %v550, %v554
          %v559 = vadd.f32 %v551, %v557
          %560 = vst.msk [vmem:[%s547] sm:$0xff] %vm435, %v558
          %561 = vst.msk [vmem:[%s547 + $0x8] sm:$0xff] %vm435, %v559
          %s562 = scalar_lea.vmem [#allocation4], 16
          %v563 = vld [vmem:[%s562] sm:$0xff]
          %v564 = vld [vmem:[%s562 + $0x8] sm:$0xff]
          %566 = vset.pattern.permute.xlu0 0
          %567 = vperm.xlu0 %566, %v528
          %v568 = vpop.permute.xlu0 %567
          %571 = vset.pattern.permute.xlu0 0
          %572 = vperm.xlu0 %571, %v530
          %v573 = vpop.permute.xlu0 %572
          %v575 = vmul.f32 %v568, %v563
          %v576 = vmul.f32 %v573, %v564
          %v578 = vsel %vm392, %v544, 0
          %v581 = vsel %vm392, %v546, 0
          %583 = vmatpush.msra.mxu0 0.0
          %584 = vmatpush.msra.mxu0 0.0
          %585 = vmatpush.msra.mxu0 0.0
          %586 = vmatpush.msra.mxu0 0.0
          %587 = vmatpush.msra.mxu0 0.0
          %588 = vmatpush.msra.mxu0 0.0
          %589 = vmatpush.msra.mxu0 0.0
          %590 = vmatpush.msra.mxu0 0.0
          %591 = vmatpush.msra.mxu0 0.0
          %592 = vmatpush.msra.mxu0 0.0
          %593 = vmatpush.msra.mxu0 0.0
          %594 = vmatpush.msra.mxu0 0.0
          %595 = vmatpush.msra.mxu0 0.0
          %596 = vmatpush.msra.mxu0 0.0
          %597 = vmatpush.msra.mxu0 %v362
          %598 = vmatpush.msra.mxu0 %v361
          %599 = vmatmul.f32.gmra.mxu0 %v578
          %v600 = vpop.f32.mrf.mxu0
          %v601 = vadd.f32 0.0, %v600
          %602 = vmatmul.f32.gmra.mxu0 %v581
          %v603 = vpop.f32.mrf.mxu0
          %v604 = vadd.f32 0.0, %v603
          %605 = vdwg.mxu0
          %v606 = vadd.f32 %v575, %v601
          %v607 = vadd.f32 %v576, %v604
          %608 = vst [vmem:[%s562] sm:$0xff] %v606
          %609 = vst [vmem:[%s562 + $0x8] sm:$0xff] %v607
          %610 = vst.msk [vmem:[%s514] sm:$0xff] %vm435, %v523
          %611 = vst.msk [vmem:[%s514 + $0x8] sm:$0xff] %vm435, %v524
        $region52: #{tpu_custom_call.1} parent=31 // pred_fallthru
          _
        %p612 = scmp.gt.s32.totalorder %s354, %s333
        %p613 = pnand %p353, %p612
        %p614 = pneg %p613
        // Predicated region
        $region53: #{tpu_custom_call.1} parent=31 // pred_check
          _
        $region54: #{tpu_custom_call.1} parent=31 // pred_check_branch
          %616 = sbr.rel (%p613) target = $region56
        $region55: #{tpu_custom_call.1} parent=31 // pred_region
          %v617 = vld [vmem:[%s283] sm:$0xff]
          %v618 = vld [vmem:[%s283 + $0x8] sm:$0xff]
          %v619 = vld [vmem:[%s293] sm:$0xff]
          %v620 = vld [vmem:[%s293 + $0x8] sm:$0xff]
          %v621 = vlaneseq
          %v622 = vshrl.u32 %v621, 7
          %v623 = vadd.s32 %v622, 8
          %v624 = vstv %s333
          %v625 = vadd.s32 %v624, %v622
          %v626 = vadd.s32 %v624, %v623
          %v627 = vlaneseq
          %v628 = vand.u32 %v627, 127
          %v629 = vstv %s334
          %v630 = vadd.s32 %v629, %v628
          %vm631 = vcmp.le.s32.totalorder %v630, %v625
          %vm632 = vcmp.le.s32.totalorder %v630, %v626
          %v633 = vld [vmem:[%s273] sm:$0xff]
          %v634 = vld [vmem:[%s273 + $0x10] sm:$0xff]
          %v635 = vmul.f32 %v633, 0.088388346
          %v636 = vmul.f32 %v634, 0.088388346
          %637 = vmatpush.xpose.msra.mxu0 0.0
          %638 = vmatpush.xpose.msra.mxu0 0.0
          %639 = vmatpush.xpose.msra.mxu0 0.0
          %640 = vmatpush.xpose.msra.mxu0 0.0
          %641 = vmatpush.xpose.msra.mxu0 0.0
          %642 = vmatpush.xpose.msra.mxu0 0.0
          %643 = vmatpush.xpose.msra.mxu0 0.0
          %644 = vmatpush.xpose.msra.mxu0 0.0
          %645 = vmatpush.xpose.msra.mxu0 0.0
          %646 = vmatpush.xpose.msra.mxu0 0.0
          %647 = vmatpush.xpose.msra.mxu0 0.0
          %648 = vmatpush.xpose.msra.mxu0 0.0
          %649 = vmatpush.xpose.msra.mxu0 0.0
          %650 = vmatpush.xpose.msra.mxu0 0.0
          %651 = vmatpush.xpose.msra.mxu0 %v618
          %652 = vmatpush.xpose.msra.mxu0 %v617
          %653 = vmatmul.f32.gmra.mxu0 %v635
          %v654 = vpop.f32.mrf.mxu0
          %v655 = vadd.f32 0.0, %v654
          %656 = vmatmul.f32.gmra.mxu0 %v636
          %v657 = vpop.f32.mrf.mxu0
          %v658 = vadd.f32 0.0, %v657
          %659 = vdwg.mxu0
          %v660 = vsel %vm631, %v655, -inf
          %v661 = vsel %vm632, %v658, -inf
          %v662 = vld [vmem:[#allocation2] sm:$0xff]
          %v663 = vld [vmem:[#allocation2 + $0x8] sm:$0xff]
          %vm664 = vcmask 130048
          %v665 = vsel %vm664, %v660, -inf
          %666 = vmax.xlane.f32.xlu0 %v665
          %v667 = vpop.xlane.xlu0 %666
          %v668 = vsel %vm664, %v661, -inf
          %669 = vmax.xlane.f32.xlu0 %v668
          %v670 = vpop.xlane.xlu0 %669
          %v671 = vmax.f32 %v662, %v667
          %v672 = vmax.f32 %v663, %v670
          %v673 = vsub.f32 %v662, %v671
          %v674 = vsub.f32 %v663, %v672
          %v675 = vmul.f32 %v673, 1.442695
          %v676 = vpow.pop %v675
          %v677 = vmul.f32 %v674, 1.442695
          %v678 = vpow.pop %v677
          %680 = vset.pattern.permute.xlu0 0
          %681 = vperm.xlu0 %680, %v671
          %v682 = vpop.permute.xlu0 %681
          %685 = vset.pattern.permute.xlu0 0
          %686 = vperm.xlu0 %685, %v672
          %v687 = vpop.permute.xlu0 %686
          %v689 = vsub.f32 %v660, %v682
          %v690 = vsub.f32 %v661, %v687
          %v691 = vmul.f32 %v689, 1.442695
          %v692 = vpow.pop %v691
          %v693 = vmul.f32 %v690, 1.442695
          %v694 = vpow.pop %v693
          %v695 = vld [vmem:[#allocation3] sm:$0xff]
          %v696 = vld [vmem:[#allocation3 + $0x8] sm:$0xff]
          %v697 = vmul.f32 %v676, %v695
          %v698 = vmul.f32 %v678, %v696
          %v699 = vsel %vm664, %v692, 0.0
          %700 = vadd.xlane.f32.xlu0 %v699
          %v701 = vpop.xlane.xlu0 %700
          %v702 = vsel %vm664, %v694, 0.0
          %703 = vadd.xlane.f32.xlu0 %v702
          %v704 = vpop.xlane.xlu0 %703
          %v705 = vadd.f32 %v697, %v701
          %v706 = vadd.f32 %v698, %v704
          %vm707 = vcmask 7168
          %708 = vst.msk [vmem:[#allocation3] sm:$0xff] %vm707, %v705
          %709 = vst.msk [vmem:[#allocation3 + $0x8] sm:$0xff] %vm707, %v706
          %v710 = vld [vmem:[#allocation4] sm:$0xff]
          %v711 = vld [vmem:[#allocation4 + $0x8] sm:$0xff]
          %713 = vset.pattern.permute.xlu0 0
          %714 = vperm.xlu0 %713, %v676
          %v715 = vpop.permute.xlu0 %714
          %718 = vset.pattern.permute.xlu0 0
          %719 = vperm.xlu0 %718, %v678
          %v720 = vpop.permute.xlu0 %719
          %v722 = vmul.f32 %v715, %v710
          %v723 = vmul.f32 %v720, %v711
          %v725 = vsel %vm664, %v692, 0
          %v728 = vsel %vm664, %v694, 0
          %730 = vmatpush.msra.mxu0 0.0
          %731 = vmatpush.msra.mxu0 0.0
          %732 = vmatpush.msra.mxu0 0.0
          %733 = vmatpush.msra.mxu0 0.0
          %734 = vmatpush.msra.mxu0 0.0
          %735 = vmatpush.msra.mxu0 0.0
          %736 = vmatpush.msra.mxu0 0.0
          %737 = vmatpush.msra.mxu0 0.0
          %738 = vmatpush.msra.mxu0 0.0
          %739 = vmatpush.msra.mxu0 0.0
          %740 = vmatpush.msra.mxu0 0.0
          %741 = vmatpush.msra.mxu0 0.0
          %742 = vmatpush.msra.mxu0 0.0
          %743 = vmatpush.msra.mxu0 0.0
          %744 = vmatpush.msra.mxu0 %v620
          %745 = vmatpush.msra.mxu0 %v619
          %746 = vmatmul.f32.gmra.mxu0 %v725
          %v747 = vpop.f32.mrf.mxu0
          %v748 = vadd.f32 0.0, %v747
          %749 = vmatmul.f32.gmra.mxu0 %v728
          %v750 = vpop.f32.mrf.mxu0
          %v751 = vadd.f32 0.0, %v750
          %752 = vdwg.mxu0
          %v753 = vadd.f32 %v722, %v748
          %v754 = vadd.f32 %v723, %v751
          %755 = vst [vmem:[#allocation4] sm:$0xff] %v753
          %756 = vst [vmem:[#allocation4 + $0x8] sm:$0xff] %v754
          %757 = vst.msk [vmem:[#allocation2] sm:$0xff] %vm707, %v671
          %758 = vst.msk [vmem:[#allocation2 + $0x8] sm:$0xff] %vm707, %v672
          %v759 = vld [vmem:[%s273 + $0x8] sm:$0xff]
          %v760 = vld [vmem:[%s273 + $0x18] sm:$0xff]
          %v761 = vmul.f32 %v759, 0.088388346
          %v762 = vmul.f32 %v760, 0.088388346
          %763 = vmatpush.xpose.msra.mxu0 0.0
          %764 = vmatpush.xpose.msra.mxu0 0.0
          %765 = vmatpush.xpose.msra.mxu0 0.0
          %766 = vmatpush.xpose.msra.mxu0 0.0
          %767 = vmatpush.xpose.msra.mxu0 0.0
          %768 = vmatpush.xpose.msra.mxu0 0.0
          %769 = vmatpush.xpose.msra.mxu0 0.0
          %770 = vmatpush.xpose.msra.mxu0 0.0
          %771 = vmatpush.xpose.msra.mxu0 0.0
          %772 = vmatpush.xpose.msra.mxu0 0.0
          %773 = vmatpush.xpose.msra.mxu0 0.0
          %774 = vmatpush.xpose.msra.mxu0 0.0
          %775 = vmatpush.xpose.msra.mxu0 0.0
          %776 = vmatpush.xpose.msra.mxu0 0.0
          %777 = vmatpush.xpose.msra.mxu0 %v618
          %778 = vmatpush.xpose.msra.mxu0 %v617
          %779 = vmatmul.f32.gmra.mxu0 %v761
          %v780 = vpop.f32.mrf.mxu0
          %v781 = vadd.f32 0.0, %v780
          %782 = vmatmul.f32.gmra.mxu0 %v762
          %v783 = vpop.f32.mrf.mxu0
          %v784 = vadd.f32 0.0, %v783
          %785 = vdwg.mxu0
          %v786 = vsel %vm631, %v781, -inf
          %v787 = vsel %vm632, %v784, -inf
          %s788 = scalar_lea.vmem [#allocation2], 16
          %v789 = vld [vmem:[%s788] sm:$0xff]
          %v790 = vld [vmem:[%s788 + $0x8] sm:$0xff]
          %v791 = vsel %vm664, %v786, -inf
          %792 = vmax.xlane.f32.xlu0 %v791
          %v793 = vpop.xlane.xlu0 %792
          %v794 = vsel %vm664, %v787, -inf
          %795 = vmax.xlane.f32.xlu0 %v794
          %v796 = vpop.xlane.xlu0 %795
          %v797 = vmax.f32 %v789, %v793
          %v798 = vmax.f32 %v790, %v796
          %v799 = vsub.f32 %v789, %v797
          %v800 = vsub.f32 %v790, %v798
          %v801 = vmul.f32 %v799, 1.442695
          %v802 = vpow.pop %v801
          %v803 = vmul.f32 %v800, 1.442695
          %v804 = vpow.pop %v803
          %806 = vset.pattern.permute.xlu0 0
          %807 = vperm.xlu0 %806, %v797
          %v808 = vpop.permute.xlu0 %807
          %811 = vset.pattern.permute.xlu0 0
          %812 = vperm.xlu0 %811, %v798
          %v813 = vpop.permute.xlu0 %812
          %v815 = vsub.f32 %v786, %v808
          %v816 = vsub.f32 %v787, %v813
          %v817 = vmul.f32 %v815, 1.442695
          %v818 = vpow.pop %v817
          %v819 = vmul.f32 %v816, 1.442695
          %v820 = vpow.pop %v819
          %s821 = scalar_lea.vmem [#allocation3], 16
          %v822 = vld [vmem:[%s821] sm:$0xff]
          %v823 = vld [vmem:[%s821 + $0x8] sm:$0xff]
          %v824 = vmul.f32 %v802, %v822
          %v825 = vmul.f32 %v804, %v823
          %v826 = vsel %vm664, %v818, 0.0
          %827 = vadd.xlane.f32.xlu0 %v826
          %v828 = vpop.xlane.xlu0 %827
          %v829 = vsel %vm664, %v820, 0.0
          %830 = vadd.xlane.f32.xlu0 %v829
          %v831 = vpop.xlane.xlu0 %830
          %v832 = vadd.f32 %v824, %v828
          %v833 = vadd.f32 %v825, %v831
          %834 = vst.msk [vmem:[%s821] sm:$0xff] %vm707, %v832
          %835 = vst.msk [vmem:[%s821 + $0x8] sm:$0xff] %vm707, %v833
          %s836 = scalar_lea.vmem [#allocation4], 16
          %v837 = vld [vmem:[%s836] sm:$0xff]
          %v838 = vld [vmem:[%s836 + $0x8] sm:$0xff]
          %840 = vset.pattern.permute.xlu0 0
          %841 = vperm.xlu0 %840, %v802
          %v842 = vpop.permute.xlu0 %841
          %845 = vset.pattern.permute.xlu0 0
          %846 = vperm.xlu0 %845, %v804
          %v847 = vpop.permute.xlu0 %846
          %v849 = vmul.f32 %v842, %v837
          %v850 = vmul.f32 %v847, %v838
          %v852 = vsel %vm664, %v818, 0
          %v855 = vsel %vm664, %v820, 0
          %857 = vmatpush.msra.mxu0 0.0
          %858 = vmatpush.msra.mxu0 0.0
          %859 = vmatpush.msra.mxu0 0.0
          %860 = vmatpush.msra.mxu0 0.0
          %861 = vmatpush.msra.mxu0 0.0
          %862 = vmatpush.msra.mxu0 0.0
          %863 = vmatpush.msra.mxu0 0.0
          %864 = vmatpush.msra.mxu0 0.0
          %865 = vmatpush.msra.mxu0 0.0
          %866 = vmatpush.msra.mxu0 0.0
          %867 = vmatpush.msra.mxu0 0.0
          %868 = vmatpush.msra.mxu0 0.0
          %869 = vmatpush.msra.mxu0 0.0
          %870 = vmatpush.msra.mxu0 0.0
          %871 = vmatpush.msra.mxu0 %v620
          %872 = vmatpush.msra.mxu0 %v619
          %873 = vmatmul.f32.gmra.mxu0 %v852
          %v874 = vpop.f32.mrf.mxu0
          %v875 = vadd.f32 0.0, %v874
          %876 = vmatmul.f32.gmra.mxu0 %v855
          %v877 = vpop.f32.mrf.mxu0
          %v878 = vadd.f32 0.0, %v877
          %879 = vdwg.mxu0
          %v880 = vadd.f32 %v849, %v875
          %v881 = vadd.f32 %v850, %v878
          %882 = vst [vmem:[%s836] sm:$0xff] %v880
          %883 = vst [vmem:[%s836 + $0x8] sm:$0xff] %v881
          %884 = vst.msk [vmem:[%s788] sm:$0xff] %vm707, %v797
          %885 = vst.msk [vmem:[%s788 + $0x8] sm:$0xff] %vm707, %v798
        $region56: #{tpu_custom_call.1} parent=31 // pred_fallthru
          _
        // Predicated region
        $region57: #{tpu_custom_call.1} parent=31 // pred_check
          %p886 = pneg %p335
        $region58: #{tpu_custom_call.1} parent=31 // pred_check_branch
          %888 = sbr.rel (%p886) target = $region60
        $region59: #{tpu_custom_call.1} parent=31 // pred_region
          %v889 = vld [vmem:[#allocation3] sm:$0xff]
          %v890 = vld [vmem:[#allocation3 + $0x8] sm:$0xff]
          %v891 = vrcp.pop %v889
          %v892 = vrcp.pop %v890
          %v893 = vld [vmem:[#allocation4] sm:$0xff]
          %v894 = vld [vmem:[#allocation4 + $0x8] sm:$0xff]
          %896 = vset.pattern.permute.xlu0 0
          %897 = vperm.xlu0 %896, %v891
          %v898 = vpop.permute.xlu0 %897
          %901 = vset.pattern.permute.xlu0 0
          %902 = vperm.xlu0 %901, %v892
          %v903 = vpop.permute.xlu0 %902
          %v905 = vmul.f32 %v893, %v898
          %v906 = vmul.f32 %v894, %v903
          %907 = vst [vmem:[%s326] sm:$0xff] %v905
          %908 = vst [vmem:[%s326 + $0x10] sm:$0xff] %v906
          %s909 = scalar_lea.vmem [#allocation3], 16
          %v910 = vld [vmem:[%s909] sm:$0xff]
          %v911 = vld [vmem:[%s909 + $0x8] sm:$0xff]
          %v912 = vrcp.pop %v910
          %v913 = vrcp.pop %v911
          %s914 = scalar_lea.vmem [#allocation4], 16
          %v915 = vld [vmem:[%s914] sm:$0xff]
          %v916 = vld [vmem:[%s914 + $0x8] sm:$0xff]
          %918 = vset.pattern.permute.xlu0 0
          %919 = vperm.xlu0 %918, %v912
          %v920 = vpop.permute.xlu0 %919
          %923 = vset.pattern.permute.xlu0 0
          %924 = vperm.xlu0 %923, %v913
          %v925 = vpop.permute.xlu0 %924
          %v927 = vmul.f32 %v915, %v920
          %v928 = vmul.f32 %v916, %v925
          %929 = vst [vmem:[%s326 + $0x8] sm:$0xff] %v927
          %930 = vst [vmem:[%s326 + $0x18] sm:$0xff] %v928
        $region60: #{tpu_custom_call.1} parent=31 // pred_fallthru
          _
        %s931 = sand.u32 %s151, 1
        %s932 = scalar_lea.sflag [#allocation7], %s931
        %s933 = sand.u32 %s151, 1
        %s934 = smul.addr %s933, 32
        %s935 = scalar_lea.vmem [#allocation11], %s934
        // Predicated region
        $region61: #{tpu_custom_call.1} parent=31 // pred_check
          %p936 = pneg %p161
        $region62: #{tpu_custom_call.1} parent=31 // pred_check_branch
          %938 = sbr.rel (%p936) target = $region64
        $region63: #{tpu_custom_call.1} parent=31 // pred_region
          %s939 = smul.u32 2, %s31
          %s940 = smul.u32 2, %s30
          %942 = vsyncadd %s932, 0
          %s943 = smul.addr %s939, 4
          %s944 = sadd.s32 %s940, %s943
          %s945 = smul.addr %s29, 8
          %s946 = sadd.s32 %s944, %s945
          %s947 = smul.addr %s946, 8
          %s948 = scalar_lea.hbm %s3, %s947
          %s949 = sshll.u32 %s935, 4
          %s950 = int_to_ptr.vmem [resolvable:$true] %s949
          %s951 = sshll.u32 %s948, 4
          %s952 = int_to_ptr.hbm [resolvable:$true] %s951
          %957 = dma.vmem_to_hbm [thread:$0]  %s950, 512, %s952, %s932, 256, 512, 16
        $region64: #{tpu_custom_call.1} parent=31 // pred_fallthru
          _
      $region32: #{tpu_custom_call.1} parent=5 // pred_fallthru
        _
      %p958 = scmp.le.s32.totalorder 2, %s18
      // Predicated region
      $region65: #{tpu_custom_call.1} parent=5 // pred_check
        %p959 = pneg %p958
      $region66: #{tpu_custom_call.1} parent=5 // pred_check_branch
        %961 = sbr.rel (%p959) target = $region68
      $region67: #{tpu_custom_call.1} parent=5 // pred_region
        %s962 = ssub.s32 %s18, 2
        // Predicated region
        $region69: #{tpu_custom_call.1} parent=67 // pred_check
          %p963 = pneg %p167
        $region70: #{tpu_custom_call.1} parent=67 // pred_check_branch
          %965 = sbr.rel (%p963) target = $region72
        $region71: #{tpu_custom_call.1} parent=67 // pred_region
          %s966 = sand.u32 %s152, 1
          %s967 = scalar_lea.sflag [#allocation7], %s966
          %s968 = sand.u32 %s152, 1
          %s969 = smul.addr %s968, 32
          %s970 = scalar_lea.vmem [#allocation11], %s969
          %972 = dma.done %s967, 512
        $region72: #{tpu_custom_call.1} parent=67 // pred_fallthru
          _
      $region68: #{tpu_custom_call.1} parent=5 // pred_fallthru
        _
    $region6: #{tpu_custom_call.1} parent=1 // loop_footer
      %s22 = sadd.s32 1, %s18
    $region7: #{tpu_custom_call.1} parent=1 // loop_footer_branch
      %17 = sbr.rel target = $region3
    $region8: #{tpu_custom_call.1} parent=1 // loop_exit
      _
    %973 = vsyncpa [#allocation6], 1
    %s974 = scalar_lea.sflag [#allocation6], 1
    %975 = vsyncpa %s974, 1
    %976 = vsyncpa [#allocation9], 1
    %s977 = scalar_lea.sflag [#allocation9], 1
    %978 = vsyncpa %s977, 1
    %979 = vsyncpa [#allocation7], 1
    %s980 = scalar_lea.sflag [#allocation7], 1
    %981 = vsyncpa %s980, 1

</llo_original>
